<compile_context>
chip_gen: v6e
topology: v6e:2x2x1
jax: 0.10.0
libtpu: 0.0.40
codegen_flags: <defaults>
</compile_context>

<pallas_src>
import functools

import jax
import jax.numpy as jnp
import numpy as np
from jax import lax
from jax.experimental import pallas as pl
from jax.experimental.pallas import tpu as pltpu


# ----------------------------------------------------------------------------
# Pallas kernel: one grid step == tb tasks.  For each task it evaluates the
# query set with the meta weights (step 0) and after each of the
# `update_step` inner SGD updates, writing per-task, per-step query loss and
# #correct directly into the output block.
# ----------------------------------------------------------------------------
def maml_task_kernel(xs_ref, ys_ref, xq_ref, yq_ref, wt_ref, b_ref,
                     loss_ref, corr_ref, *, setsz, qsz, update_lr, update_step):
    tb = xs_ref.shape[0]            # tasks handled by this grid step (static)
    n_way = wt_ref.shape[0]
    x_dtype = xs_ref.dtype
    mixed = x_dtype != jnp.float32  # bf16 activations, f32 math/accumulation

    inv_setsz = 1.0 / float(setsz)
    inv_qsz = 1.0 / float(qsz)

    # Meta weights, shared across tasks, lane-dense [nWay, D] layout.
    w0t = wt_ref[...]               # [nWay, D] f32
    b0 = b_ref[...]                 # [1, nWay] f32

    def logits_fn(x, wt, b):
        # x:[M, D] . wt:[nWay, D] -> [M, nWay]; contract D of both operands so
        # the weight never lives in the lane-padded [D, nWay] layout and the
        # big activation tile is never transposed or up-cast.
        rhs = wt.astype(x_dtype) if mixed else wt        # tiny [nWay, D] cast
        z = lax.dot_general(x, rhs, (((1,), (1,)), ((), ())),
                            preferred_element_type=jnp.float32)
        return z + b

    def query_eval(xq, yq, wt, b):
        zq = logits_fn(xq, wt, b)                                   # [qsz, nWay]
        m = jnp.max(zq, axis=-1, keepdims=True)
        zs = zq - m
        logp = zs - jnp.log(jnp.sum(jnp.exp(zs), axis=-1, keepdims=True))
        loss = -jnp.sum(logp * yq, keepdims=True) * inv_qsz         # (1, 1)
        # first-occurrence argmax over the class (lane) axis
        idx = lax.broadcasted_iota(jnp.int32, zq.shape, 1)
        cand = jnp.where(zq == m, idx, n_way)
        pred = jnp.min(cand, axis=-1, keepdims=True)                # [qsz, 1]
        correct = jnp.sum((idx == pred).astype(jnp.float32) * yq,
                          keepdims=True)                            # (1, 1)
        return loss, correct

    def sgd_step(xs, ys, wt, b):
        zs = logits_fn(xs, wt, b)                                   # [setsz, nWay]
        m = jnp.max(zs, axis=-1, keepdims=True)
        e = jnp.exp(zs - m)
        p = e / jnp.sum(e, axis=-1, keepdims=True)
        g = (p - ys) * inv_setsz                                    # [setsz, nWay] f32
        # gwT[nWay, D] = g^T @ xs : only the tiny g is cast / "transposed" by
        # the contraction; xs stays in its natural (bf16) layout.
        lhs = g.astype(x_dtype) if mixed else g
        gwt = lax.dot_general(lhs, xs, (((0,), (0,)), ((), ())),
                              preferred_element_type=jnp.float32)   # [nWay, D]
        gb = jnp.sum(g, axis=0, keepdims=True)                      # [1, nWay]
        return wt - update_lr * gwt, b - update_lr * gb

    # Static unroll over the (small) task batch; all indices below are static.
    for i in range(tb):
        xs = xs_ref[i]              # [setsz, D]  (x_dtype, no f32 copy)
        ys = ys_ref[i]              # [setsz, nWay] f32
        xq = xq_ref[i]              # [qsz, D]    (x_dtype)
        yq = yq_ref[i]              # [qsz, nWay] f32

        wt, b = w0t, b0
        for k in range(update_step + 1):
            if k > 0:               # k == 0 is the meta-weight (step-0) eval
                wt, b = sgd_step(xs, ys, wt, b)
            l, c = query_eval(xq, yq, wt, b)
            loss_ref[pl.ds(i, 1), pl.ds(k, 1)] = l
            corr_ref[pl.ds(i, 1), pl.ds(k, 1)] = c


# ----------------------------------------------------------------------------
# tb / VMEM sizing: biggest task batch whose double-buffered blocks fit the
# device's VMEM (with headroom), capped so the parallel grid has >= 2 steps.
# ----------------------------------------------------------------------------
def _pick_tb_and_vmem(taskNum, setsz, qsz, D, nWay, x_itemsize):
    try:
        vmem_cap = int(pltpu.get_tpu_info().vmem_capacity_bytes)
    except Exception:
        vmem_cap = 64 * 1024 * 1024          # conservative (v7x per-TC VMEM)
    budget = int(vmem_cap * 0.6)

    per_task = (setsz + qsz) * D * x_itemsize + (setsz + qsz) * nWay * 4
    weights = 2 * (nWay * D + nWay) * 4      # double-buffered weight blocks
    temps = 4 * nWay * D * 4 + 8 * (setsz + qsz) * 128 * 4  # f32 gwt/wt/logits

    tb = 8
    while tb > 1 and (2 * tb * per_task + weights + temps) > budget:
        tb //= 2
    if taskNum >= 2:                          # >= 2 grid steps -> both v7x TCs work
        tb = min(tb, -(-taskNum // 2))
    tb = max(1, min(tb, taskNum))

    vmem_limit = int((2 * tb * per_task + weights + temps) * 1.25)
    vmem_limit = max(vmem_limit, 32 * 1024 * 1024)
    vmem_limit = min(vmem_limit, vmem_cap)
    return tb, vmem_limit


# ----------------------------------------------------------------------------
# Wrapper: flatten images, one-hot labels, call the kernel over batched tasks,
# reduce over tasks.
# ----------------------------------------------------------------------------
def meta_forward(xSpt, ySpt, xQry, yQry, W, b, *, update_lr, update_step,
                 x_dtype=jnp.bfloat16):
    assert update_step >= 1
    taskNum, setsz, c, h, w = xSpt.shape
    qsz = xQry.shape[1]
    D = c * h * w
    nWay = W.shape[1]
    n_out = update_step + 1                  # step 0 (meta weights) + inner steps

    # Activations in x_dtype (bf16 default halves HBM traffic); labels f32.
    xs = xSpt.reshape(taskNum, setsz, D).astype(x_dtype)
    xq = xQry.reshape(taskNum, qsz, D).astype(x_dtype)
    ys = jax.nn.one_hot(ySpt, nWay, dtype=jnp.float32)
    yq = jax.nn.one_hot(yQry, nWay, dtype=jnp.float32)

    w_t = jnp.asarray(W, jnp.float32).T                  # lane-dense [nWay, D]
    b2d = jnp.asarray(b, jnp.float32).reshape(1, nWay)

    tb, vmem_limit = _pick_tb_and_vmem(taskNum, setsz, qsz, D, nWay,
                                       jnp.dtype(x_dtype).itemsize)
    padded = -(-taskNum // tb) * tb
    if padded != taskNum:
        pad = padded - taskNum
        pad3 = lambda a: jnp.pad(a, ((0, pad), (0, 0), (0, 0)))
        xs, ys, xq, yq = pad3(xs), pad3(ys), pad3(xq), pad3(yq)
    G = padded // tb

    kernel = functools.partial(
        maml_task_kernel, setsz=setsz, qsz=qsz,
        update_lr=float(update_lr), update_step=int(update_step))

    losses, corrects = pl.pallas_call(
        kernel,
        out_shape=(jax.ShapeDtypeStruct((G, tb, n_out), jnp.float32),
                   jax.ShapeDtypeStruct((G, tb, n_out), jnp.float32)),
        grid_spec=pltpu.PrefetchScalarGridSpec(
            num_scalar_prefetch=0,
            grid=(G,),
            in_specs=[
                pl.BlockSpec((tb, setsz, D), lambda t: (t, 0, 0)),
                pl.BlockSpec((tb, setsz, nWay), lambda t: (t, 0, 0)),
                pl.BlockSpec((tb, qsz, D), lambda t: (t, 0, 0)),
                pl.BlockSpec((tb, qsz, nWay), lambda t: (t, 0, 0)),
                pl.BlockSpec((nWay, D), lambda t: (0, 0)),
                pl.BlockSpec((1, nWay), lambda t: (0, 0)),
            ],
            out_specs=(pl.BlockSpec((None, tb, n_out), lambda t: (t, 0, 0)),
                       pl.BlockSpec((None, tb, n_out), lambda t: (t, 0, 0))),
        ),
        compiler_params=pltpu.CompilerParams(
            dimension_semantics=("parallel",),          # per-task outputs
            vmem_limit_bytes=vmem_limit),
    )(xs, ys, xq, yq, w_t, b2d)

    losses = losses.reshape(padded, n_out)[:taskNum]     # [T, S+1]
    corrects = corrects.reshape(padded, n_out)[:taskNum]  # [T, S+1]

    accs = jnp.sum(corrects, axis=0) / (qsz * taskNum)   # matches PyTorch `accs`
    loss_q = jnp.sum(losses[:, -1]) / taskNum            # final-step meta loss
    return accs, loss_q


# ----------------------------------------------------------------------------
# Pure-NumPy reference (same linear learner) for a correctness check.
# ----------------------------------------------------------------------------
def meta_forward_ref(xSpt, ySpt, xQry, yQry, W, b, *, update_lr, update_step):
    taskNum, setsz = xSpt.shape[0], xSpt.shape[1]
    qsz = xQry.shape[1]
    D = xSpt.shape[2] * xSpt.shape[3] * xSpt.shape[4]
    nWay = W.shape[1]
    xs = np.asarray(xSpt, np.float32).reshape(taskNum, setsz, D)
    xq = np.asarray(xQry, np.float32).reshape(taskNum, qsz, D)
    ys = np.asarray(ySpt)
    yq = np.asarray(yQry)
    W = np.asarray(W, np.float32)
    b = np.asarray(b, np.float32)

    def ce_and_grad(x, y, w, bb):
        z = x @ w + bb
        z = z - z.max(-1, keepdims=True)
        p = np.exp(z) / np.exp(z).sum(-1, keepdims=True)
        oh = np.eye(nWay, dtype=np.float32)[y]
        loss = -np.mean(np.log(p[np.arange(len(y)), y]))
        g = (p - oh) / len(y)
        return loss, x.T @ g, g.sum(0, keepdims=True), z

    losses = np.zeros(update_step + 1)
    corrects = np.zeros(update_step + 1)
    for i in range(taskNum):
        w, bb = W, b
        lq, _, _, zq = ce_and_grad(xq[i], yq[i], w, bb)
        losses[0] += lq
        corrects[0] += (zq.argmax(-1) == yq[i]).sum()
        _, gw, gb, _ = ce_and_grad(xs[i], ys[i], w, bb)
        w, bb = w - update_lr * gw, bb - update_lr * gb
        lq, _, _, zq = ce_and_grad(xq[i], yq[i], w, bb)
        losses[1] += lq
        corrects[1] += (zq.argmax(-1) == yq[i]).sum()
        for k in range(1, update_step):
            _, gw, gb, _ = ce_and_grad(xs[i], ys[i], w, bb)
            w, bb = w - update_lr * gw, bb - update_lr * gb
            lq, _, _, zq = ce_and_grad(xq[i], yq[i], w, bb)
            losses[k + 1] += lq
            corrects[k + 1] += (zq.argmax(-1) == yq[i]).sum()
    return corrects / (qsz * taskNum), losses[-1] / taskNum


if __name__ == "__main__":
    # args (small, consistent with the module's __init__)
    taskNum, nWay, kShot, kQuery = 2, 5, 1, 3
    updateStep = 3
    update_lr = 0.4
    c, h, w = 1, 16, 16
    setsz = nWay * kShot
    qsz = nWay * kQuery
    D = c * h * w

    key = jax.random.PRNGKey(0)
    k1, k2, k3, k4, k5 = jax.random.split(key, 5)

    xSpt = jax.random.normal(k1, (taskNum, setsz, c, h, w), jnp.float32)
    xQry = jax.random.normal(k2, (taskNum, qsz, c, h, w), jnp.float32)
    ySpt = jax.random.randint(k3, (taskNum, setsz), 0, nWay, jnp.int32)
    yQry = jax.random.randint(k4, (taskNum, qsz), 0, nWay, jnp.int32)

    # deterministic learner parameters (linear classifier: logits = x @ W + b)
    W = 0.01 * jax.random.normal(k5, (D, nWay), jnp.float32)
    b = jnp.zeros((1, nWay), jnp.float32)

    accs_ref, loss_ref = meta_forward_ref(xSpt, ySpt, xQry, yQry, W, b,
                                          update_lr=update_lr,
                                          update_step=updateStep)

    # exact-math path (f32 activations) -> tight check against the reference
    accs, loss_q = meta_forward(xSpt, ySpt, xQry, yQry, W, b,
                                update_lr=update_lr, update_step=updateStep,
                                x_dtype=jnp.float32)
    accs = jax.block_until_ready(accs)
    loss_q = jax.block_until_ready(loss_q)
    np.testing.assert_allclose(np.asarray(accs), accs_ref, atol=1e-5)
    np.testing.assert_allclose(float(loss_q), loss_ref, rtol=2e-3, atol=2e-3)

    # default fast path (bf16 activations) -> exercise it, sanity-check finite
    accs_bf, loss_bf = meta_forward(xSpt, ySpt, xQry, yQry, W, b,
                                    update_lr=update_lr, update_step=updateStep)
    accs_bf = jax.block_until_ready(accs_bf)
    loss_bf = jax.block_until_ready(loss_bf)
    assert np.all(np.isfinite(np.asarray(accs_bf)))
    assert np.isfinite(float(loss_bf))

    print("KERNEL_OK")
</pallas_src>

<mosaic_0001>
module attributes {stable_mosaic.version = 11 : i64} {
  func.func @maml_task_kernel(%arg0: i32, %arg1: memref<1x5x256xf32, #tpu.memory_space<vmem>>, %arg2: memref<1x5x5xf32, #tpu.memory_space<vmem>>, %arg3: memref<1x15x256xf32, #tpu.memory_space<vmem>>, %arg4: memref<1x15x5xf32, #tpu.memory_space<vmem>>, %arg5: memref<5x256xf32, #tpu.memory_space<vmem>>, %arg6: memref<1x5xf32, #tpu.memory_space<vmem>>, %arg7: memref<1x1x4xf32, #tpu.memory_space<vmem>>, %arg8: memref<1x1x4xf32, #tpu.memory_space<vmem>>) attributes {dimension_semantics = [#tpu.dimension_semantics<parallel>], iteration_bounds = array<i64: 2>, scalar_prefetch = 0 : i64, scratch_operands = 0 : i64, tpu.core_type = #tpu.core_type<tc>, window_params = [{transform_indices = @transform_0, window_bounds = array<i64: 1, 5, 256>}, {transform_indices = @transform_1, window_bounds = array<i64: 1, 5, 5>}, {transform_indices = @transform_2, window_bounds = array<i64: 1, 15, 256>}, {transform_indices = @transform_3, window_bounds = array<i64: 1, 15, 5>}, {pipeline_mode = #tpu.pipeline_mode<synchronous>, transform_indices = @transform_4, window_bounds = array<i64: 5, 256>}, {pipeline_mode = #tpu.pipeline_mode<synchronous>, transform_indices = @transform_5, window_bounds = array<i64: 1, 5>}, {transform_indices = @transform_6, window_bounds = array<i64: 1, 1, 4>}, {transform_indices = @transform_7, window_bounds = array<i64: 1, 1, 4>}]} {
    %c0 = arith.constant 0 : index
    %c0_0 = arith.constant 0 : index
    %0 = vector.load %arg5[%c0, %c0_0] : memref<5x256xf32, #tpu.memory_space<vmem>>, vector<5x256xf32>
    %c0_1 = arith.constant 0 : index
    %c0_2 = arith.constant 0 : index
    %1 = vector.load %arg6[%c0_1, %c0_2] : memref<1x5xf32, #tpu.memory_space<vmem>>, vector<1x5xf32>
    %c0_3 = arith.constant 0 : index
    %c0_4 = arith.constant 0 : index
    %c0_5 = arith.constant 0 : index
    %2 = vector.load %arg1[%c0_3, %c0_4, %c0_5] : memref<1x5x256xf32, #tpu.memory_space<vmem>>, vector<1x5x256xf32>
    %3 = vector.shape_cast %2 : vector<1x5x256xf32> to vector<5x256xf32>
    %c0_6 = arith.constant 0 : index
    %c0_7 = arith.constant 0 : index
    %c0_8 = arith.constant 0 : index
    %4 = vector.load %arg2[%c0_6, %c0_7, %c0_8] : memref<1x5x5xf32, #tpu.memory_space<vmem>>, vector<1x5x5xf32>
    %5 = vector.shape_cast %4 : vector<1x5x5xf32> to vector<5x5xf32>
    %c0_9 = arith.constant 0 : index
    %c0_10 = arith.constant 0 : index
    %c0_11 = arith.constant 0 : index
    %6 = vector.load %arg3[%c0_9, %c0_10, %c0_11] : memref<1x15x256xf32, #tpu.memory_space<vmem>>, vector<1x15x256xf32>
    %7 = vector.shape_cast %6 : vector<1x15x256xf32> to vector<15x256xf32>
    %c0_12 = arith.constant 0 : index
    %c0_13 = arith.constant 0 : index
    %c0_14 = arith.constant 0 : index
    %8 = vector.load %arg4[%c0_12, %c0_13, %c0_14] : memref<1x15x5xf32, #tpu.memory_space<vmem>>, vector<1x15x5xf32>
    %9 = vector.shape_cast %8 : vector<1x15x5xf32> to vector<15x5xf32>
    %cst = arith.constant dense<0.000000e+00> : vector<15x5xf32>
    %10 = tpu.matmul %7, %0, %cst {dimension_numbers = #tpu.dot_dimension_numbers<[1], [1], [0], [0], [0, 0, 1, 0], [], []>} : vector<15x256xf32>, vector<5x256xf32>, vector<15x5xf32> -> vector<15x5xf32>
    %11 = vector.broadcast %1 : vector<1x5xf32> to vector<15x5xf32>
    %12 = arith.addf %10, %11 : vector<15x5xf32>
    %cst_15 = arith.constant dense<0xFF800000> : vector<15xf32>
    %13 = vector.multi_reduction <maximumf>, %12, %cst_15 [1] : vector<15x5xf32> to vector<15xf32>
    %14 = vector.shape_cast %13 : vector<15xf32> to vector<15x1xf32>
    %15 = vector.broadcast %14 : vector<15x1xf32> to vector<15x5xf32>
    %16 = arith.subf %12, %15 : vector<15x5xf32>
    %17 = math.exp %16 : vector<15x5xf32>
    %cst_16 = arith.constant dense<0.000000e+00> : vector<15xf32>
    %18 = vector.multi_reduction <add>, %17, %cst_16 [1] : vector<15x5xf32> to vector<15xf32>
    %19 = vector.shape_cast %18 : vector<15xf32> to vector<15x1xf32>
    %20 = math.log %19 : vector<15x1xf32>
    %21 = vector.broadcast %20 : vector<15x1xf32> to vector<15x5xf32>
    %22 = arith.subf %16, %21 : vector<15x5xf32>
    %23 = arith.mulf %22, %9 : vector<15x5xf32>
    %24 = vector.shape_cast %23 : vector<15x5xf32> to vector<1x15x5xf32>
    %cst_17 = arith.constant dense<0.000000e+00> : vector<1xf32>
    %25 = vector.multi_reduction <add>, %24, %cst_17 [1, 2] : vector<1x15x5xf32> to vector<1xf32>
    %26 = vector.shape_cast %25 : vector<1xf32> to vector<1x1x1xf32>
    %27 = vector.extract %26[0, 0, 0] : f32 from vector<1x1x1xf32>
    %28 = vector.broadcast %27 : f32 to vector<1x1xf32>
    %cst_18 = arith.constant 0.000000e+00 : f32
    %29 = vector.broadcast %cst_18 : f32 to vector<1x1xf32>
    %30 = arith.subf %29, %28 : vector<1x1xf32>
    %cst_19 = arith.constant 0.0666666701 : f32
    %31 = vector.broadcast %cst_19 : f32 to vector<1x1xf32>
    %32 = arith.mulf %30, %31 : vector<1x1xf32>
    %33 = tpu.iota {dimensions = array<i32: 1>} : vector<15x5xi32>
    %34 = vector.broadcast %14 : vector<15x1xf32> to vector<15x5xf32>
    %35 = arith.cmpf oeq, %12, %34 : vector<15x5xf32>
    %c5_i32 = arith.constant 5 : i32
    %36 = vector.broadcast %c5_i32 : i32 to vector<15x5xi32>
    %37 = arith.select %35, %33, %36 : vector<15x5xi1>, vector<15x5xi32>
    %cst_20 = arith.constant dense<2147483647> : vector<15xi32>
    %38 = vector.multi_reduction <minsi>, %37, %cst_20 [1] : vector<15x5xi32> to vector<15xi32>
    %39 = vector.shape_cast %38 : vector<15xi32> to vector<15x1xi32>
    %40 = vector.broadcast %39 : vector<15x1xi32> to vector<15x5xi32>
    %41 = arith.cmpi eq, %33, %40 : vector<15x5xi32>
    %42 = arith.extui %41 : vector<15x5xi1> to vector<15x5xi32>
    %43 = arith.sitofp %42 : vector<15x5xi32> to vector<15x5xf32>
    %44 = arith.mulf %43, %9 : vector<15x5xf32>
    %45 = vector.shape_cast %44 : vector<15x5xf32> to vector<1x15x5xf32>
    %cst_21 = arith.constant dense<0.000000e+00> : vector<1xf32>
    %46 = vector.multi_reduction <add>, %45, %cst_21 [1, 2] : vector<1x15x5xf32> to vector<1xf32>
    %47 = vector.shape_cast %46 : vector<1xf32> to vector<1x1x1xf32>
    %48 = vector.extract %47[0, 0, 0] : f32 from vector<1x1x1xf32>
    %49 = vector.broadcast %48 : f32 to vector<1x1xf32>
    %c0_22 = arith.constant 0 : index
    %c0_23 = arith.constant 0 : index
    %c0_24 = arith.constant 0 : index
    %50 = vector.load %arg7[%c0_22, %c0_23, %c0_24] : memref<1x1x4xf32, #tpu.memory_space<vmem>>, vector<1x1x1xf32>
    %51 = vector.shape_cast %50 : vector<1x1x1xf32> to vector<1x1xf32>
    %52 = vector.shape_cast %32 : vector<1x1xf32> to vector<1x1x1xf32>
    tpu.vector_store %arg7[%c0_22, %c0_23, %c0_24], %52 {strides = array<i32>} : memref<1x1x4xf32, #tpu.memory_space<vmem>>, vector<1x1x1xf32>,
    %c0_25 = arith.constant 0 : index
    %c0_26 = arith.constant 0 : index
    %c0_27 = arith.constant 0 : index
    %53 = vector.load %arg8[%c0_25, %c0_26, %c0_27] : memref<1x1x4xf32, #tpu.memory_space<vmem>>, vector<1x1x1xf32>
    %54 = vector.shape_cast %53 : vector<1x1x1xf32> to vector<1x1xf32>
    %55 = vector.shape_cast %49 : vector<1x1xf32> to vector<1x1x1xf32>
    tpu.vector_store %arg8[%c0_25, %c0_26, %c0_27], %55 {strides = array<i32>} : memref<1x1x4xf32, #tpu.memory_space<vmem>>, vector<1x1x1xf32>,
    %cst_28 = arith.constant dense<0.000000e+00> : vector<5x5xf32>
    %56 = tpu.matmul %3, %0, %cst_28 {dimension_numbers = #tpu.dot_dimension_numbers<[1], [1], [0], [0], [0, 0, 1, 0], [], []>} : vector<5x256xf32>, vector<5x256xf32>, vector<5x5xf32> -> vector<5x5xf32>
    %57 = vector.broadcast %1 : vector<1x5xf32> to vector<5x5xf32>
    %58 = arith.addf %56, %57 : vector<5x5xf32>
    %cst_29 = arith.constant dense<0xFF800000> : vector<5xf32>
    %59 = vector.multi_reduction <maximumf>, %58, %cst_29 [1] : vector<5x5xf32> to vector<5xf32>
    %60 = vector.shape_cast %59 : vector<5xf32> to vector<5x1xf32>
    %61 = vector.broadcast %60 : vector<5x1xf32> to vector<5x5xf32>
    %62 = arith.subf %58, %61 : vector<5x5xf32>
    %63 = math.exp %62 : vector<5x5xf32>
    %cst_30 = arith.constant dense<0.000000e+00> : vector<5xf32>
    %64 = vector.multi_reduction <add>, %63, %cst_30 [1] : vector<5x5xf32> to vector<5xf32>
    %65 = vector.shape_cast %64 : vector<5xf32> to vector<5x1xf32>
    %66 = vector.broadcast %65 : vector<5x1xf32> to vector<5x5xf32>
    %67 = arith.divf %63, %66 : vector<5x5xf32>
    %68 = arith.subf %67, %5 : vector<5x5xf32>
    %cst_31 = arith.constant 2.000000e-01 : f32
    %69 = vector.broadcast %cst_31 : f32 to vector<5x5xf32>
    %70 = arith.mulf %68, %69 : vector<5x5xf32>
    %cst_32 = arith.constant dense<0.000000e+00> : vector<5x256xf32>
    %71 = tpu.matmul %70, %3, %cst_32 {dimension_numbers = #tpu.dot_dimension_numbers<[0], [0], [1], [1], [0, 1, 1, 1], [], []>} : vector<5x5xf32>, vector<5x256xf32>, vector<5x256xf32> -> vector<5x256xf32>
    %cst_33 = arith.constant dense<0.000000e+00> : vector<5xf32>
    %72 = vector.multi_reduction <add>, %70, %cst_33 [0] : vector<5x5xf32> to vector<5xf32>
    %73 = vector.shape_cast %72 : vector<5xf32> to vector<1x5xf32>
    %cst_34 = arith.constant 4.000000e-01 : f32
    %74 = vector.broadcast %cst_34 : f32 to vector<5x256xf32>
    %75 = arith.mulf %74, %71 : vector<5x256xf32>
    %76 = arith.subf %0, %75 : vector<5x256xf32>
    %cst_35 = arith.constant 4.000000e-01 : f32
    %77 = vector.broadcast %cst_35 : f32 to vector<1x5xf32>
    %78 = arith.mulf %77, %73 : vector<1x5xf32>
    %79 = arith.subf %1, %78 : vector<1x5xf32>
    %cst_36 = arith.constant dense<0.000000e+00> : vector<15x5xf32>
    %80 = tpu.matmul %7, %76, %cst_36 {dimension_numbers = #tpu.dot_dimension_numbers<[1], [1], [0], [0], [0, 0, 1, 0], [], []>} : vector<15x256xf32>, vector<5x256xf32>, vector<15x5xf32> -> vector<15x5xf32>
    %81 = vector.broadcast %79 : vector<1x5xf32> to vector<15x5xf32>
    %82 = arith.addf %80, %81 : vector<15x5xf32>
    %cst_37 = arith.constant dense<0xFF800000> : vector<15xf32>
    %83 = vector.multi_reduction <maximumf>, %82, %cst_37 [1] : vector<15x5xf32> to vector<15xf32>
    %84 = vector.shape_cast %83 : vector<15xf32> to vector<15x1xf32>
    %85 = vector.broadcast %84 : vector<15x1xf32> to vector<15x5xf32>
    %86 = arith.subf %82, %85 : vector<15x5xf32>
    %87 = math.exp %86 : vector<15x5xf32>
    %cst_38 = arith.constant dense<0.000000e+00> : vector<15xf32>
    %88 = vector.multi_reduction <add>, %87, %cst_38 [1] : vector<15x5xf32> to vector<15xf32>
    %89 = vector.shape_cast %88 : vector<15xf32> to vector<15x1xf32>
    %90 = math.log %89 : vector<15x1xf32>
    %91 = vector.broadcast %90 : vector<15x1xf32> to vector<15x5xf32>
    %92 = arith.subf %86, %91 : vector<15x5xf32>
    %93 = arith.mulf %92, %9 : vector<15x5xf32>
    %94 = vector.shape_cast %93 : vector<15x5xf32> to vector<1x15x5xf32>
    %cst_39 = arith.constant dense<0.000000e+00> : vector<1xf32>
    %95 = vector.multi_reduction <add>, %94, %cst_39 [1, 2] : vector<1x15x5xf32> to vector<1xf32>
    %96 = vector.shape_cast %95 : vector<1xf32> to vector<1x1x1xf32>
    %97 = vector.extract %96[0, 0, 0] : f32 from vector<1x1x1xf32>
    %98 = vector.broadcast %97 : f32 to vector<1x1xf32>
    %cst_40 = arith.constant 0.000000e+00 : f32
    %99 = vector.broadcast %cst_40 : f32 to vector<1x1xf32>
    %100 = arith.subf %99, %98 : vector<1x1xf32>
    %cst_41 = arith.constant 0.0666666701 : f32
    %101 = vector.broadcast %cst_41 : f32 to vector<1x1xf32>
    %102 = arith.mulf %100, %101 : vector<1x1xf32>
    %103 = tpu.iota {dimensions = array<i32: 1>} : vector<15x5xi32>
    %104 = vector.broadcast %84 : vector<15x1xf32> to vector<15x5xf32>
    %105 = arith.cmpf oeq, %82, %104 : vector<15x5xf32>
    %c5_i32_42 = arith.constant 5 : i32
    %106 = vector.broadcast %c5_i32_42 : i32 to vector<15x5xi32>
    %107 = arith.select %105, %103, %106 : vector<15x5xi1>, vector<15x5xi32>
    %cst_43 = arith.constant dense<2147483647> : vector<15xi32>
    %108 = vector.multi_reduction <minsi>, %107, %cst_43 [1] : vector<15x5xi32> to vector<15xi32>
    %109 = vector.shape_cast %108 : vector<15xi32> to vector<15x1xi32>
    %110 = vector.broadcast %109 : vector<15x1xi32> to vector<15x5xi32>
    %111 = arith.cmpi eq, %103, %110 : vector<15x5xi32>
    %112 = arith.extui %111 : vector<15x5xi1> to vector<15x5xi32>
    %113 = arith.sitofp %112 : vector<15x5xi32> to vector<15x5xf32>
    %114 = arith.mulf %113, %9 : vector<15x5xf32>
    %115 = vector.shape_cast %114 : vector<15x5xf32> to vector<1x15x5xf32>
    %cst_44 = arith.constant dense<0.000000e+00> : vector<1xf32>
    %116 = vector.multi_reduction <add>, %115, %cst_44 [1, 2] : vector<1x15x5xf32> to vector<1xf32>
    %117 = vector.shape_cast %116 : vector<1xf32> to vector<1x1x1xf32>
    %118 = vector.extract %117[0, 0, 0] : f32 from vector<1x1x1xf32>
    %119 = vector.broadcast %118 : f32 to vector<1x1xf32>
    %c0_45 = arith.constant 0 : index
    %c0_46 = arith.constant 0 : index
    %c1 = arith.constant 1 : index
    %120 = vector.load %arg7[%c0_45, %c0_46, %c1] : memref<1x1x4xf32, #tpu.memory_space<vmem>>, vector<1x1x1xf32>
    %121 = vector.shape_cast %120 : vector<1x1x1xf32> to vector<1x1xf32>
    %122 = vector.shape_cast %102 : vector<1x1xf32> to vector<1x1x1xf32>
    tpu.vector_store %arg7[%c0_45, %c0_46, %c1], %122 {strides = array<i32>} : memref<1x1x4xf32, #tpu.memory_space<vmem>>, vector<1x1x1xf32>,
    %c0_47 = arith.constant 0 : index
    %c0_48 = arith.constant 0 : index
    %c1_49 = arith.constant 1 : index
    %123 = vector.load %arg8[%c0_47, %c0_48, %c1_49] : memref<1x1x4xf32, #tpu.memory_space<vmem>>, vector<1x1x1xf32>
    %124 = vector.shape_cast %123 : vector<1x1x1xf32> to vector<1x1xf32>
    %125 = vector.shape_cast %119 : vector<1x1xf32> to vector<1x1x1xf32>
    tpu.vector_store %arg8[%c0_47, %c0_48, %c1_49], %125 {strides = array<i32>} : memref<1x1x4xf32, #tpu.memory_space<vmem>>, vector<1x1x1xf32>,
    %cst_50 = arith.constant dense<0.000000e+00> : vector<5x5xf32>
    %126 = tpu.matmul %3, %76, %cst_50 {dimension_numbers = #tpu.dot_dimension_numbers<[1], [1], [0], [0], [0, 0, 1, 0], [], []>} : vector<5x256xf32>, vector<5x256xf32>, vector<5x5xf32> -> vector<5x5xf32>
    %127 = vector.broadcast %79 : vector<1x5xf32> to vector<5x5xf32>
    %128 = arith.addf %126, %127 : vector<5x5xf32>
    %cst_51 = arith.constant dense<0xFF800000> : vector<5xf32>
    %129 = vector.multi_reduction <maximumf>, %128, %cst_51 [1] : vector<5x5xf32> to vector<5xf32>
    %130 = vector.shape_cast %129 : vector<5xf32> to vector<5x1xf32>
    %131 = vector.broadcast %130 : vector<5x1xf32> to vector<5x5xf32>
    %132 = arith.subf %128, %131 : vector<5x5xf32>
    %133 = math.exp %132 : vector<5x5xf32>
    %cst_52 = arith.constant dense<0.000000e+00> : vector<5xf32>
    %134 = vector.multi_reduction <add>, %133, %cst_52 [1] : vector<5x5xf32> to vector<5xf32>
    %135 = vector.shape_cast %134 : vector<5xf32> to vector<5x1xf32>
    %136 = vector.broadcast %135 : vector<5x1xf32> to vector<5x5xf32>
    %137 = arith.divf %133, %136 : vector<5x5xf32>
    %138 = arith.subf %137, %5 : vector<5x5xf32>
    %cst_53 = arith.constant 2.000000e-01 : f32
    %139 = vector.broadcast %cst_53 : f32 to vector<5x5xf32>
    %140 = arith.mulf %138, %139 : vector<5x5xf32>
    %cst_54 = arith.constant dense<0.000000e+00> : vector<5x256xf32>
    %141 = tpu.matmul %140, %3, %cst_54 {dimension_numbers = #tpu.dot_dimension_numbers<[0], [0], [1], [1], [0, 1, 1, 1], [], []>} : vector<5x5xf32>, vector<5x256xf32>, vector<5x256xf32> -> vector<5x256xf32>
    %cst_55 = arith.constant dense<0.000000e+00> : vector<5xf32>
    %142 = vector.multi_reduction <add>, %140, %cst_55 [0] : vector<5x5xf32> to vector<5xf32>
    %143 = vector.shape_cast %142 : vector<5xf32> to vector<1x5xf32>
    %cst_56 = arith.constant 4.000000e-01 : f32
    %144 = vector.broadcast %cst_56 : f32 to vector<5x256xf32>
    %145 = arith.mulf %144, %141 : vector<5x256xf32>
    %146 = arith.subf %76, %145 : vector<5x256xf32>
    %cst_57 = arith.constant 4.000000e-01 : f32
    %147 = vector.broadcast %cst_57 : f32 to vector<1x5xf32>
    %148 = arith.mulf %147, %143 : vector<1x5xf32>
    %149 = arith.subf %79, %148 : vector<1x5xf32>
    %cst_58 = arith.constant dense<0.000000e+00> : vector<15x5xf32>
    %150 = tpu.matmul %7, %146, %cst_58 {dimension_numbers = #tpu.dot_dimension_numbers<[1], [1], [0], [0], [0, 0, 1, 0], [], []>} : vector<15x256xf32>, vector<5x256xf32>, vector<15x5xf32> -> vector<15x5xf32>
    %151 = vector.broadcast %149 : vector<1x5xf32> to vector<15x5xf32>
    %152 = arith.addf %150, %151 : vector<15x5xf32>
    %cst_59 = arith.constant dense<0xFF800000> : vector<15xf32>
    %153 = vector.multi_reduction <maximumf>, %152, %cst_59 [1] : vector<15x5xf32> to vector<15xf32>
    %154 = vector.shape_cast %153 : vector<15xf32> to vector<15x1xf32>
    %155 = vector.broadcast %154 : vector<15x1xf32> to vector<15x5xf32>
    %156 = arith.subf %152, %155 : vector<15x5xf32>
    %157 = math.exp %156 : vector<15x5xf32>
    %cst_60 = arith.constant dense<0.000000e+00> : vector<15xf32>
    %158 = vector.multi_reduction <add>, %157, %cst_60 [1] : vector<15x5xf32> to vector<15xf32>
    %159 = vector.shape_cast %158 : vector<15xf32> to vector<15x1xf32>
    %160 = math.log %159 : vector<15x1xf32>
    %161 = vector.broadcast %160 : vector<15x1xf32> to vector<15x5xf32>
    %162 = arith.subf %156, %161 : vector<15x5xf32>
    %163 = arith.mulf %162, %9 : vector<15x5xf32>
    %164 = vector.shape_cast %163 : vector<15x5xf32> to vector<1x15x5xf32>
    %cst_61 = arith.constant dense<0.000000e+00> : vector<1xf32>
    %165 = vector.multi_reduction <add>, %164, %cst_61 [1, 2] : vector<1x15x5xf32> to vector<1xf32>
    %166 = vector.shape_cast %165 : vector<1xf32> to vector<1x1x1xf32>
    %167 = vector.extract %166[0, 0, 0] : f32 from vector<1x1x1xf32>
    %168 = vector.broadcast %167 : f32 to vector<1x1xf32>
    %cst_62 = arith.constant 0.000000e+00 : f32
    %169 = vector.broadcast %cst_62 : f32 to vector<1x1xf32>
    %170 = arith.subf %169, %168 : vector<1x1xf32>
    %cst_63 = arith.constant 0.0666666701 : f32
    %171 = vector.broadcast %cst_63 : f32 to vector<1x1xf32>
    %172 = arith.mulf %170, %171 : vector<1x1xf32>
    %173 = tpu.iota {dimensions = array<i32: 1>} : vector<15x5xi32>
    %174 = vector.broadcast %154 : vector<15x1xf32> to vector<15x5xf32>
    %175 = arith.cmpf oeq, %152, %174 : vector<15x5xf32>
    %c5_i32_64 = arith.constant 5 : i32
    %176 = vector.broadcast %c5_i32_64 : i32 to vector<15x5xi32>
    %177 = arith.select %175, %173, %176 : vector<15x5xi1>, vector<15x5xi32>
    %cst_65 = arith.constant dense<2147483647> : vector<15xi32>
    %178 = vector.multi_reduction <minsi>, %177, %cst_65 [1] : vector<15x5xi32> to vector<15xi32>
    %179 = vector.shape_cast %178 : vector<15xi32> to vector<15x1xi32>
    %180 = vector.broadcast %179 : vector<15x1xi32> to vector<15x5xi32>
    %181 = arith.cmpi eq, %173, %180 : vector<15x5xi32>
    %182 = arith.extui %181 : vector<15x5xi1> to vector<15x5xi32>
    %183 = arith.sitofp %182 : vector<15x5xi32> to vector<15x5xf32>
    %184 = arith.mulf %183, %9 : vector<15x5xf32>
    %185 = vector.shape_cast %184 : vector<15x5xf32> to vector<1x15x5xf32>
    %cst_66 = arith.constant dense<0.000000e+00> : vector<1xf32>
    %186 = vector.multi_reduction <add>, %185, %cst_66 [1, 2] : vector<1x15x5xf32> to vector<1xf32>
    %187 = vector.shape_cast %186 : vector<1xf32> to vector<1x1x1xf32>
    %188 = vector.extract %187[0, 0, 0] : f32 from vector<1x1x1xf32>
    %189 = vector.broadcast %188 : f32 to vector<1x1xf32>
    %c0_67 = arith.constant 0 : index
    %c0_68 = arith.constant 0 : index
    %c2 = arith.constant 2 : index
    %190 = vector.load %arg7[%c0_67, %c0_68, %c2] : memref<1x1x4xf32, #tpu.memory_space<vmem>>, vector<1x1x1xf32>
    %191 = vector.shape_cast %190 : vector<1x1x1xf32> to vector<1x1xf32>
    %192 = vector.shape_cast %172 : vector<1x1xf32> to vector<1x1x1xf32>
    tpu.vector_store %arg7[%c0_67, %c0_68, %c2], %192 {strides = array<i32>} : memref<1x1x4xf32, #tpu.memory_space<vmem>>, vector<1x1x1xf32>,
    %c0_69 = arith.constant 0 : index
    %c0_70 = arith.constant 0 : index
    %c2_71 = arith.constant 2 : index
    %193 = vector.load %arg8[%c0_69, %c0_70, %c2_71] : memref<1x1x4xf32, #tpu.memory_space<vmem>>, vector<1x1x1xf32>
    %194 = vector.shape_cast %193 : vector<1x1x1xf32> to vector<1x1xf32>
    %195 = vector.shape_cast %189 : vector<1x1xf32> to vector<1x1x1xf32>
    tpu.vector_store %arg8[%c0_69, %c0_70, %c2_71], %195 {strides = array<i32>} : memref<1x1x4xf32, #tpu.memory_space<vmem>>, vector<1x1x1xf32>,
    %cst_72 = arith.constant dense<0.000000e+00> : vector<5x5xf32>
    %196 = tpu.matmul %3, %146, %cst_72 {dimension_numbers = #tpu.dot_dimension_numbers<[1], [1], [0], [0], [0, 0, 1, 0], [], []>} : vector<5x256xf32>, vector<5x256xf32>, vector<5x5xf32> -> vector<5x5xf32>
    %197 = vector.broadcast %149 : vector<1x5xf32> to vector<5x5xf32>
    %198 = arith.addf %196, %197 : vector<5x5xf32>
    %cst_73 = arith.constant dense<0xFF800000> : vector<5xf32>
    %199 = vector.multi_reduction <maximumf>, %198, %cst_73 [1] : vector<5x5xf32> to vector<5xf32>
    %200 = vector.shape_cast %199 : vector<5xf32> to vector<5x1xf32>
    %201 = vector.broadcast %200 : vector<5x1xf32> to vector<5x5xf32>
    %202 = arith.subf %198, %201 : vector<5x5xf32>
    %203 = math.exp %202 : vector<5x5xf32>
    %cst_74 = arith.constant dense<0.000000e+00> : vector<5xf32>
    %204 = vector.multi_reduction <add>, %203, %cst_74 [1] : vector<5x5xf32> to vector<5xf32>
    %205 = vector.shape_cast %204 : vector<5xf32> to vector<5x1xf32>
    %206 = vector.broadcast %205 : vector<5x1xf32> to vector<5x5xf32>
    %207 = arith.divf %203, %206 : vector<5x5xf32>
    %208 = arith.subf %207, %5 : vector<5x5xf32>
    %cst_75 = arith.constant 2.000000e-01 : f32
    %209 = vector.broadcast %cst_75 : f32 to vector<5x5xf32>
    %210 = arith.mulf %208, %209 : vector<5x5xf32>
    %cst_76 = arith.constant dense<0.000000e+00> : vector<5x256xf32>
    %211 = tpu.matmul %210, %3, %cst_76 {dimension_numbers = #tpu.dot_dimension_numbers<[0], [0], [1], [1], [0, 1, 1, 1], [], []>} : vector<5x5xf32>, vector<5x256xf32>, vector<5x256xf32> -> vector<5x256xf32>
    %cst_77 = arith.constant dense<0.000000e+00> : vector<5xf32>
    %212 = vector.multi_reduction <add>, %210, %cst_77 [0] : vector<5x5xf32> to vector<5xf32>
    %213 = vector.shape_cast %212 : vector<5xf32> to vector<1x5xf32>
    %cst_78 = arith.constant 4.000000e-01 : f32
    %214 = vector.broadcast %cst_78 : f32 to vector<5x256xf32>
    %215 = arith.mulf %214, %211 : vector<5x256xf32>
    %216 = arith.subf %146, %215 : vector<5x256xf32>
    %cst_79 = arith.constant 4.000000e-01 : f32
    %217 = vector.broadcast %cst_79 : f32 to vector<1x5xf32>
    %218 = arith.mulf %217, %213 : vector<1x5xf32>
    %219 = arith.subf %149, %218 : vector<1x5xf32>
    %cst_80 = arith.constant dense<0.000000e+00> : vector<15x5xf32>
    %220 = tpu.matmul %7, %216, %cst_80 {dimension_numbers = #tpu.dot_dimension_numbers<[1], [1], [0], [0], [0, 0, 1, 0], [], []>} : vector<15x256xf32>, vector<5x256xf32>, vector<15x5xf32> -> vector<15x5xf32>
    %221 = vector.broadcast %219 : vector<1x5xf32> to vector<15x5xf32>
    %222 = arith.addf %220, %221 : vector<15x5xf32>
    %cst_81 = arith.constant dense<0xFF800000> : vector<15xf32>
    %223 = vector.multi_reduction <maximumf>, %222, %cst_81 [1] : vector<15x5xf32> to vector<15xf32>
    %224 = vector.shape_cast %223 : vector<15xf32> to vector<15x1xf32>
    %225 = vector.broadcast %224 : vector<15x1xf32> to vector<15x5xf32>
    %226 = arith.subf %222, %225 : vector<15x5xf32>
    %227 = math.exp %226 : vector<15x5xf32>
    %cst_82 = arith.constant dense<0.000000e+00> : vector<15xf32>
    %228 = vector.multi_reduction <add>, %227, %cst_82 [1] : vector<15x5xf32> to vector<15xf32>
    %229 = vector.shape_cast %228 : vector<15xf32> to vector<15x1xf32>
    %230 = math.log %229 : vector<15x1xf32>
    %231 = vector.broadcast %230 : vector<15x1xf32> to vector<15x5xf32>
    %232 = arith.subf %226, %231 : vector<15x5xf32>
    %233 = arith.mulf %232, %9 : vector<15x5xf32>
    %234 = vector.shape_cast %233 : vector<15x5xf32> to vector<1x15x5xf32>
    %cst_83 = arith.constant dense<0.000000e+00> : vector<1xf32>
    %235 = vector.multi_reduction <add>, %234, %cst_83 [1, 2] : vector<1x15x5xf32> to vector<1xf32>
    %236 = vector.shape_cast %235 : vector<1xf32> to vector<1x1x1xf32>
    %237 = vector.extract %236[0, 0, 0] : f32 from vector<1x1x1xf32>
    %238 = vector.broadcast %237 : f32 to vector<1x1xf32>
    %cst_84 = arith.constant 0.000000e+00 : f32
    %239 = vector.broadcast %cst_84 : f32 to vector<1x1xf32>
    %240 = arith.subf %239, %238 : vector<1x1xf32>
    %cst_85 = arith.constant 0.0666666701 : f32
    %241 = vector.broadcast %cst_85 : f32 to vector<1x1xf32>
    %242 = arith.mulf %240, %241 : vector<1x1xf32>
    %243 = tpu.iota {dimensions = array<i32: 1>} : vector<15x5xi32>
    %244 = vector.broadcast %224 : vector<15x1xf32> to vector<15x5xf32>
    %245 = arith.cmpf oeq, %222, %244 : vector<15x5xf32>
    %c5_i32_86 = arith.constant 5 : i32
    %246 = vector.broadcast %c5_i32_86 : i32 to vector<15x5xi32>
    %247 = arith.select %245, %243, %246 : vector<15x5xi1>, vector<15x5xi32>
    %cst_87 = arith.constant dense<2147483647> : vector<15xi32>
    %248 = vector.multi_reduction <minsi>, %247, %cst_87 [1] : vector<15x5xi32> to vector<15xi32>
    %249 = vector.shape_cast %248 : vector<15xi32> to vector<15x1xi32>
    %250 = vector.broadcast %249 : vector<15x1xi32> to vector<15x5xi32>
    %251 = arith.cmpi eq, %243, %250 : vector<15x5xi32>
    %252 = arith.extui %251 : vector<15x5xi1> to vector<15x5xi32>
    %253 = arith.sitofp %252 : vector<15x5xi32> to vector<15x5xf32>
    %254 = arith.mulf %253, %9 : vector<15x5xf32>
    %255 = vector.shape_cast %254 : vector<15x5xf32> to vector<1x15x5xf32>
    %cst_88 = arith.constant dense<0.000000e+00> : vector<1xf32>
    %256 = vector.multi_reduction <add>, %255, %cst_88 [1, 2] : vector<1x15x5xf32> to vector<1xf32>
    %257 = vector.shape_cast %256 : vector<1xf32> to vector<1x1x1xf32>
    %258 = vector.extract %257[0, 0, 0] : f32 from vector<1x1x1xf32>
    %259 = vector.broadcast %258 : f32 to vector<1x1xf32>
    %c0_89 = arith.constant 0 : index
    %c0_90 = arith.constant 0 : index
    %c3 = arith.constant 3 : index
    %260 = vector.load %arg7[%c0_89, %c0_90, %c3] : memref<1x1x4xf32, #tpu.memory_space<vmem>>, vector<1x1x1xf32>
    %261 = vector.shape_cast %260 : vector<1x1x1xf32> to vector<1x1xf32>
    %262 = vector.shape_cast %242 : vector<1x1xf32> to vector<1x1x1xf32>
    tpu.vector_store %arg7[%c0_89, %c0_90, %c3], %262 {strides = array<i32>} : memref<1x1x4xf32, #tpu.memory_space<vmem>>, vector<1x1x1xf32>,
    %c0_91 = arith.constant 0 : index
    %c0_92 = arith.constant 0 : index
    %c3_93 = arith.constant 3 : index
    %263 = vector.load %arg8[%c0_91, %c0_92, %c3_93] : memref<1x1x4xf32, #tpu.memory_space<vmem>>, vector<1x1x1xf32>
    %264 = vector.shape_cast %263 : vector<1x1x1xf32> to vector<1x1xf32>
    %265 = vector.shape_cast %259 : vector<1x1xf32> to vector<1x1x1xf32>
    tpu.vector_store %arg8[%c0_91, %c0_92, %c3_93], %265 {strides = array<i32>} : memref<1x1x4xf32, #tpu.memory_space<vmem>>, vector<1x1x1xf32>,
    return
  }
  func.func @transform_0(%arg0: i32) -> (i32, i32, i32) {
    %c0_i32 = arith.constant 0 : i32
    %c0_i32_0 = arith.constant 0 : i32
    %c0_i32_1 = arith.constant 0 : i32
    return %arg0, %c0_i32, %c0_i32_0 : i32, i32, i32
  }
  func.func @transform_1(%arg0: i32) -> (i32, i32, i32) {
    %c0_i32 = arith.constant 0 : i32
    %c0_i32_0 = arith.constant 0 : i32
    %c0_i32_1 = arith.constant 0 : i32
    return %arg0, %c0_i32, %c0_i32_0 : i32, i32, i32
  }
  func.func @transform_2(%arg0: i32) -> (i32, i32, i32) {
    %c0_i32 = arith.constant 0 : i32
    %c0_i32_0 = arith.constant 0 : i32
    %c0_i32_1 = arith.constant 0 : i32
    return %arg0, %c0_i32, %c0_i32_0 : i32, i32, i32
  }
  func.func @transform_3(%arg0: i32) -> (i32, i32, i32) {
    %c0_i32 = arith.constant 0 : i32
    %c0_i32_0 = arith.constant 0 : i32
    %c0_i32_1 = arith.constant 0 : i32
    return %arg0, %c0_i32, %c0_i32_0 : i32, i32, i32
  }
  func.func @transform_4(%arg0: i32) -> (i32, i32) {
    %c0_i32 = arith.constant 0 : i32
    %c0_i32_0 = arith.constant 0 : i32
    %c0_i32_1 = arith.constant 0 : i32
    return %c0_i32, %c0_i32_0 : i32, i32
  }
  func.func @transform_5(%arg0: i32) -> (i32, i32) {
    %c0_i32 = arith.constant 0 : i32
    %c0_i32_0 = arith.constant 0 : i32
    %c0_i32_1 = arith.constant 0 : i32
    return %c0_i32, %c0_i32_0 : i32, i32
  }
  func.func @transform_6(%arg0: i32) -> (i32, i32, i32) {
    %c0_i32 = arith.constant 0 : i32
    %c0_i32_0 = arith.constant 0 : i32
    %c0_i32_1 = arith.constant 0 : i32
    return %arg0, %c0_i32, %c0_i32_0 : i32, i32, i32
  }
  func.func @transform_7(%arg0: i32) -> (i32, i32, i32) {
    %c0_i32 = arith.constant 0 : i32
    %c0_i32_0 = arith.constant 0 : i32
    %c0_i32_1 = arith.constant 0 : i32
    return %arg0, %c0_i32, %c0_i32_0 : i32, i32, i32
  }
}

</mosaic_0001>

<llo_original>
// kernel: tpu_custom_call.1
$region0: #{tpu_custom_call.1}
  #allocation0 [shape = 'u32[]', space=smem, size = 0x4, offset = 0x4, fixed_abs, tag = 'smem constant byte address 0x4 - core index']
  #allocation1 [shape = 'u32[144,128]{1,0:T(1,128)}', space=vmem, size = 0x12000, scoped, tag = 'internal scratch']
  %s0 = inlined_call_operand.vmem [shape: f32[2,5,256], index: 0, kind: input, shape index: {}]
  %s1 = inlined_call_operand.vmem [shape: f32[2,5,5], index: 1, kind: input, shape index: {}]
  %s2 = inlined_call_operand.vmem [shape: f32[2,15,256], index: 2, kind: input, shape index: {}]
  %s3 = inlined_call_operand.vmem [shape: f32[2,15,5], index: 3, kind: input, shape index: {}]
  %s4 = inlined_call_operand.vmem [shape: f32[5,256], index: 4, kind: input, shape index: {}]
  %s5 = inlined_call_operand.vmem [shape: f32[1,5], index: 5, kind: input, shape index: {}]
  %s6 = inlined_call_operand.hbm [shape: f32[2,1,4], index: 6, kind: output, shape index: {0}]
  %s7 = inlined_call_operand.hbm [shape: f32[2,1,4], index: 7, kind: output, shape index: {1}]
  %8 = xla_tuple %s6, %s7
  %s9 = sld [smem:[#allocation0]]
  $region65: #{tpu_custom_call.1} parent=0
    _
  %s11 = ssub.s32 1, %s9
  %s12 = scalar_select 0, %s11, %s9
  $region1: #{tpu_custom_call.1} parent=0
    #allocation2 [shape = 'u8[1024]{0}', space=vmem, size = 0x400, scoped, tag = 'output window, operand 0']
    #allocation3 [shape = 's32[2]{0}', space=sflag, size = 0x8, scoped, tag = 'scoped memory for tpu_custom_call.1']
    #allocation4 [shape = 'u8[1024]{0}', space=vmem, size = 0x400, scoped, tag = 'output window, operand 1']
    #allocation5 [shape = 's32[2]{0}', space=sflag, size = 0x8, scoped, tag = 'scoped memory for tpu_custom_call.1']
    %13 = vsyncpa [#allocation3], 0
    %s14 = scalar_lea.sflag [#allocation3], 1
    %15 = vsyncpa %s14, 0
    %16 = vsyncpa [#allocation5], 0
    %s17 = scalar_lea.sflag [#allocation5], 1
    %18 = vsyncpa %s17, 0
    loop: start=0, step=1, limit=4
    $region2: #{tpu_custom_call.1} parent=1 // loop_pre_header
      _
    $region3: #{tpu_custom_call.1} parent=1 // loop_header
      %s20 = sphi 0, %s24
      %p21 = scmp.ge.s32.totalorder %s20, 4
      %s30 = sphi 0, %s32
      %s33 = sphi 0, %s30
      %s34 = sphi 0, %s33
      %s50 = sphi 0, %s34
      %s56 = sphi 0, %s58
      %s59 = sphi 0, %s56
      %s60 = sphi 0, %s59
      %s76 = sphi 0, %s60
      %s82 = sphi 0, %s84
      %s85 = sphi 0, %s82
      %s86 = sphi 0, %s85
      %s102 = sphi 0, %s86
      %s108 = sphi 0, %s110
      %s111 = sphi 0, %s108
      %s112 = sphi 0, %s111
      %s128 = sphi 0, %s112
      %s132 = sphi 0, %s132
      %s134 = sphi 0, %s132
      %s135 = sphi 0, %s134
      %s149 = sphi 0, %s135
      %s153 = sphi 0, %s153
      %s155 = sphi 0, %s153
      %s156 = sphi 0, %s155
      %s170 = sphi 0, %s156
      %s176 = sphi 0, %s178
      %s179 = sphi 0, %s176
      %s180 = sphi 0, %s179
      %s196 = sphi 0, %s180
      %s202 = sphi 0, %s204
      %s205 = sphi 0, %s202
      %s206 = sphi 0, %s205
      %s222 = sphi 0, %s206
    $region4: #{tpu_custom_call.1} parent=1 // loop_header_branch
      %23 = sbr.rel (%p21) target = $region8
    $region5: #{tpu_custom_call.1} parent=1 // loop_body
      %s25 = ssub.s32 %s20, 1
      %s26 = ssub.s32 %s20, 2
      %s27 = sadd.s32 %s20, 1
      %s28 = ssub.s32 %s20, %s27
      %p29 = scmp.eq.s32.totalorder %s28, 0
      %s31 = sadd.s32 %s30, 1
      %s32 = scalar_select %p29, %s30, %s31
      %p35 = pneg %p29
      %p36 = scmp.eq.s32.totalorder %s20, 1
      %p37 = por %p35, %p36
      %p38 = scmp.ne.s32.totalorder %s30, %s33
      %p39 = scmp.eq.s32.totalorder %s20, 0
      %p40 = por %p38, %p39
      %p41 = scmp.ne.s32.totalorder %s30, %s33
      %p42 = scmp.eq.s32.totalorder %s25, 1
      %p43 = por %p41, %p42
      %p44 = scmp.ne.s32.totalorder %s33, %s34
      %p45 = scmp.eq.s32.totalorder %s25, 0
      %p46 = por %p44, %p45
      %p47 = scmp.ne.s32.totalorder %s33, %s34
      %p48 = scmp.eq.s32.totalorder %s26, 1
      %p49 = por %p47, %p48
      %p51 = scmp.ne.s32.totalorder %s34, %s50
      %p52 = scmp.eq.s32.totalorder %s26, 0
      %p53 = por %p51, %p52
      %s54 = ssub.s32 %s20, %s27
      %p55 = scmp.eq.s32.totalorder %s54, 0
      %s57 = sadd.s32 %s56, 1
      %s58 = scalar_select %p55, %s56, %s57
      %p61 = pneg %p55
      %p62 = scmp.eq.s32.totalorder %s20, 1
      %p63 = por %p61, %p62
      %p64 = scmp.ne.s32.totalorder %s56, %s59
      %p65 = scmp.eq.s32.totalorder %s20, 0
      %p66 = por %p64, %p65
      %p67 = scmp.ne.s32.totalorder %s56, %s59
      %p68 = scmp.eq.s32.totalorder %s25, 1
      %p69 = por %p67, %p68
      %p70 = scmp.ne.s32.totalorder %s59, %s60
      %p71 = scmp.eq.s32.totalorder %s25, 0
      %p72 = por %p70, %p71
      %p73 = scmp.ne.s32.totalorder %s59, %s60
      %p74 = scmp.eq.s32.totalorder %s26, 1
      %p75 = por %p73, %p74
      %p77 = scmp.ne.s32.totalorder %s60, %s76
      %p78 = scmp.eq.s32.totalorder %s26, 0
      %p79 = por %p77, %p78
      %s80 = ssub.s32 %s20, %s27
      %p81 = scmp.eq.s32.totalorder %s80, 0
      %s83 = sadd.s32 %s82, 1
      %s84 = scalar_select %p81, %s82, %s83
      %p87 = pneg %p81
      %p88 = scmp.eq.s32.totalorder %s20, 1
      %p89 = por %p87, %p88
      %p90 = scmp.ne.s32.totalorder %s82, %s85
      %p91 = scmp.eq.s32.totalorder %s20, 0
      %p92 = por %p90, %p91
      %p93 = scmp.ne.s32.totalorder %s82, %s85
      %p94 = scmp.eq.s32.totalorder %s25, 1
      %p95 = por %p93, %p94
      %p96 = scmp.ne.s32.totalorder %s85, %s86
      %p97 = scmp.eq.s32.totalorder %s25, 0
      %p98 = por %p96, %p97
      %p99 = scmp.ne.s32.totalorder %s85, %s86
      %p100 = scmp.eq.s32.totalorder %s26, 1
      %p101 = por %p99, %p100
      %p103 = scmp.ne.s32.totalorder %s86, %s102
      %p104 = scmp.eq.s32.totalorder %s26, 0
      %p105 = por %p103, %p104
      %s106 = ssub.s32 %s20, %s27
      %p107 = scmp.eq.s32.totalorder %s106, 0
      %s109 = sadd.s32 %s108, 1
      %s110 = scalar_select %p107, %s108, %s109
      %p113 = pneg %p107
      %p114 = scmp.eq.s32.totalorder %s20, 1
      %p115 = por %p113, %p114
      %p116 = scmp.ne.s32.totalorder %s108, %s111
      %p117 = scmp.eq.s32.totalorder %s20, 0
      %p118 = por %p116, %p117
      %p119 = scmp.ne.s32.totalorder %s108, %s111
      %p120 = scmp.eq.s32.totalorder %s25, 1
      %p121 = por %p119, %p120
      %p122 = scmp.ne.s32.totalorder %s111, %s112
      %p123 = scmp.eq.s32.totalorder %s25, 0
      %p124 = por %p122, %p123
      %p125 = scmp.ne.s32.totalorder %s111, %s112
      %p126 = scmp.eq.s32.totalorder %s26, 1
      %p127 = por %p125, %p126
      %p129 = scmp.ne.s32.totalorder %s112, %s128
      %p130 = scmp.eq.s32.totalorder %s26, 0
      %p131 = por %p129, %p130
      %s133 = sadd.s32 %s132, 1
      %p136 = scmp.eq.s32.totalorder %s20, 1
      %p137 = scmp.ne.s32.totalorder %s132, %s134
      %p138 = scmp.eq.s32.totalorder %s20, 0
      %p139 = por %p137, %p138
      %p140 = scmp.ne.s32.totalorder %s132, %s134
      %p141 = scmp.eq.s32.totalorder %s25, 1
      %p142 = por %p140, %p141
      %p143 = scmp.ne.s32.totalorder %s134, %s135
      %p144 = scmp.eq.s32.totalorder %s25, 0
      %p145 = por %p143, %p144
      %p146 = scmp.ne.s32.totalorder %s134, %s135
      %p147 = scmp.eq.s32.totalorder %s26, 1
      %p148 = por %p146, %p147
      %p150 = scmp.ne.s32.totalorder %s135, %s149
      %p151 = scmp.eq.s32.totalorder %s26, 0
      %p152 = por %p150, %p151
      %s154 = sadd.s32 %s153, 1
      %p157 = scmp.eq.s32.totalorder %s20, 1
      %p158 = scmp.ne.s32.totalorder %s153, %s155
      %p159 = scmp.eq.s32.totalorder %s20, 0
      %p160 = por %p158, %p159
      %p161 = scmp.ne.s32.totalorder %s153, %s155
      %p162 = scmp.eq.s32.totalorder %s25, 1
      %p163 = por %p161, %p162
      %p164 = scmp.ne.s32.totalorder %s155, %s156
      %p165 = scmp.eq.s32.totalorder %s25, 0
      %p166 = por %p164, %p165
      %p167 = scmp.ne.s32.totalorder %s155, %s156
      %p168 = scmp.eq.s32.totalorder %s26, 1
      %p169 = por %p167, %p168
      %p171 = scmp.ne.s32.totalorder %s156, %s170
      %p172 = scmp.eq.s32.totalorder %s26, 0
      %p173 = por %p171, %p172
      %s174 = ssub.s32 %s20, %s27
      %p175 = scmp.eq.s32.totalorder %s174, 0
      %s177 = sadd.s32 %s176, 1
      %s178 = scalar_select %p175, %s176, %s177
      %p181 = pneg %p175
      %p182 = scmp.eq.s32.totalorder %s20, 1
      %p183 = por %p181, %p182
      %p184 = scmp.ne.s32.totalorder %s176, %s179
      %p185 = scmp.eq.s32.totalorder %s20, 0
      %p186 = por %p184, %p185
      %p187 = scmp.ne.s32.totalorder %s176, %s179
      %p188 = scmp.eq.s32.totalorder %s25, 1
      %p189 = por %p187, %p188
      %p190 = scmp.ne.s32.totalorder %s179, %s180
      %p191 = scmp.eq.s32.totalorder %s25, 0
      %p192 = por %p190, %p191
      %p193 = scmp.ne.s32.totalorder %s179, %s180
      %p194 = scmp.eq.s32.totalorder %s26, 1
      %p195 = por %p193, %p194
      %p197 = scmp.ne.s32.totalorder %s180, %s196
      %p198 = scmp.eq.s32.totalorder %s26, 0
      %p199 = por %p197, %p198
      %s200 = ssub.s32 %s20, %s27
      %p201 = scmp.eq.s32.totalorder %s200, 0
      %s203 = sadd.s32 %s202, 1
      %s204 = scalar_select %p201, %s202, %s203
      %p207 = pneg %p201
      %p208 = scmp.eq.s32.totalorder %s20, 1
      %p209 = por %p207, %p208
      %p210 = scmp.ne.s32.totalorder %s202, %s205
      %p211 = scmp.eq.s32.totalorder %s20, 0
      %p212 = por %p210, %p211
      %p213 = scmp.ne.s32.totalorder %s202, %s205
      %p214 = scmp.eq.s32.totalorder %s25, 1
      %p215 = por %p213, %p214
      %p216 = scmp.ne.s32.totalorder %s205, %s206
      %p217 = scmp.eq.s32.totalorder %s25, 0
      %p218 = por %p216, %p217
      %p219 = scmp.ne.s32.totalorder %s205, %s206
      %p220 = scmp.eq.s32.totalorder %s26, 1
      %p221 = por %p219, %p220
      %p223 = scmp.ne.s32.totalorder %s206, %s222
      %p224 = scmp.eq.s32.totalorder %s26, 0
      %p225 = por %p223, %p224
      %p226 = scmp.le.s32.totalorder 1, %s20
      %p227 = scmp.lt.s32.totalorder %s20, 3
      %p228 = pnand %p226, %p227
      %p229 = pneg %p228
      // Predicated region
      $region9: #{tpu_custom_call.1} parent=5 // pred_check
        _
      $region10: #{tpu_custom_call.1} parent=5 // pred_check_branch
        %231 = sbr.rel (%p228) target = $region12
      $region11: #{tpu_custom_call.1} parent=5 // pred_region
        %s232 = ssub.s32 %s20, 1
        // Predicated region
        $region13: #{tpu_custom_call.1} parent=11 // pred_check
          %p233 = pneg %p145
        $region14: #{tpu_custom_call.1} parent=11 // pred_check_branch
          %235 = sbr.rel (%p233) target = $region16
        $region15: #{tpu_custom_call.1} parent=11 // pred_region
          _
        $region16: #{tpu_custom_call.1} parent=11 // pred_fallthru
          _
        // Predicated region
        $region17: #{tpu_custom_call.1} parent=11 // pred_check
          %p236 = pneg %p166
        $region18: #{tpu_custom_call.1} parent=11 // pred_check_branch
          %238 = sbr.rel (%p236) target = $region20
        $region19: #{tpu_custom_call.1} parent=11 // pred_region
          _
        $region20: #{tpu_custom_call.1} parent=11 // pred_fallthru
          _
      $region12: #{tpu_custom_call.1} parent=5 // pred_fallthru
        _
      %p239 = scmp.lt.s32.totalorder %s20, 2
      // Predicated region
      $region21: #{tpu_custom_call.1} parent=5 // pred_check
        %p240 = pneg %p239
      $region22: #{tpu_custom_call.1} parent=5 // pred_check_branch
        %242 = sbr.rel (%p240) target = $region24
      $region23: #{tpu_custom_call.1} parent=5 // pred_region
        // Predicated region
        $region25: #{tpu_custom_call.1} parent=23 // pred_check
          %p243 = pneg %p40
        $region26: #{tpu_custom_call.1} parent=23 // pred_check_branch
          %245 = sbr.rel (%p243) target = $region28
        $region27: #{tpu_custom_call.1} parent=23 // pred_region
          %p246 = scmp.lt.s32.totalorder %s20, 1
          %s247 = scalar_select %p246, %s20, 1
          %s248 = smul.addr %s247, 2
          %s249 = smul.addr %s248, 8
          %s250 = scalar_lea.vmem %s0, %s249
        $region28: #{tpu_custom_call.1} parent=23 // pred_fallthru
          _
        // Predicated region
        $region29: #{tpu_custom_call.1} parent=23 // pred_check
          %p251 = pneg %p66
        $region30: #{tpu_custom_call.1} parent=23 // pred_check_branch
          %253 = sbr.rel (%p251) target = $region32
        $region31: #{tpu_custom_call.1} parent=23 // pred_region
          %p254 = scmp.lt.s32.totalorder %s20, 1
          %s255 = scalar_select %p254, %s20, 1
          %s256 = smul.addr %s255, 8
          %s257 = scalar_lea.vmem %s1, %s256
        $region32: #{tpu_custom_call.1} parent=23 // pred_fallthru
          _
        // Predicated region
        $region33: #{tpu_custom_call.1} parent=23 // pred_check
          %p258 = pneg %p92
        $region34: #{tpu_custom_call.1} parent=23 // pred_check_branch
          %260 = sbr.rel (%p258) target = $region36
        $region35: #{tpu_custom_call.1} parent=23 // pred_region
          %p261 = scmp.lt.s32.totalorder %s20, 1
          %s262 = scalar_select %p261, %s20, 1
          %s263 = smul.addr %s262, 4
          %s264 = smul.addr %s263, 8
          %s265 = scalar_lea.vmem %s2, %s264
        $region36: #{tpu_custom_call.1} parent=23 // pred_fallthru
          _
        // Predicated region
        $region37: #{tpu_custom_call.1} parent=23 // pred_check
          %p266 = pneg %p118
        $region38: #{tpu_custom_call.1} parent=23 // pred_check_branch
          %268 = sbr.rel (%p266) target = $region40
        $region39: #{tpu_custom_call.1} parent=23 // pred_region
          %p269 = scmp.lt.s32.totalorder %s20, 1
          %s270 = scalar_select %p269, %s20, 1
          %s271 = smul.addr %s270, 2
          %s272 = smul.addr %s271, 8
          %s273 = scalar_lea.vmem %s3, %s272
        $region40: #{tpu_custom_call.1} parent=23 // pred_fallthru
          _
      $region24: #{tpu_custom_call.1} parent=5 // pred_fallthru
        _
      %p274 = scmp.le.s32.totalorder 1, %s20
      %p275 = scmp.lt.s32.totalorder %s20, 3
      %p276 = pnand %p274, %p275
      %p277 = pneg %p276
      // Predicated region
      $region41: #{tpu_custom_call.1} parent=5 // pred_check
        _
      $region42: #{tpu_custom_call.1} parent=5 // pred_check_branch
        %279 = sbr.rel (%p276) target = $region44
      $region43: #{tpu_custom_call.1} parent=5 // pred_region
        %s280 = ssub.s32 %s20, 1
        %p281 = scmp.lt.s32.totalorder %s25, 1
        %s282 = scalar_select %p281, %s25, 1
        %s283 = smul.addr %s282, 2
        %s284 = smul.addr %s283, 8
        %s285 = scalar_lea.vmem %s0, %s284
        %p286 = pneg %p46
        %p287 = pneg %p43
        %p288 = scmp.lt.s32.totalorder %s25, 1
        %s289 = scalar_select %p288, %s25, 1
        %s290 = smul.addr %s289, 8
        %s291 = scalar_lea.vmem %s1, %s290
        %p292 = pneg %p72
        %p293 = pneg %p69
        %p294 = scmp.lt.s32.totalorder %s25, 1
        %s295 = scalar_select %p294, %s25, 1
        %s296 = smul.addr %s295, 4
        %s297 = smul.addr %s296, 8
        %s298 = scalar_lea.vmem %s2, %s297
        %p299 = pneg %p98
        %p300 = pneg %p95
        %p301 = scmp.lt.s32.totalorder %s25, 1
        %s302 = scalar_select %p301, %s25, 1
        %s303 = smul.addr %s302, 2
        %s304 = smul.addr %s303, 8
        %s305 = scalar_lea.vmem %s3, %s304
        %p306 = pneg %p124
        %p307 = pneg %p121
        %p308 = pneg %p145
        %p309 = pneg %p142
        %p310 = pneg %p166
        %p311 = pneg %p163
        %p312 = pneg %p192
        %p313 = pneg %p189
        %s314 = sand.u32 %s179, 1
        %s315 = scalar_lea.sflag [#allocation3], %s314
        %s316 = sand.u32 %s179, 1
        %s317 = scalar_lea.vmem [#allocation2], %s316
        %p318 = pneg %p218
        %p319 = pneg %p215
        %s320 = sand.u32 %s205, 1
        %s321 = scalar_lea.sflag [#allocation5], %s320
        %s322 = sand.u32 %s205, 1
        %s323 = scalar_lea.vmem [#allocation4], %s322
        %p324 = scmp.lt.s32.totalorder %s25, 1
        %s325 = scalar_select %p324, %s25, 1
        %s326 = smul.addr %s325, 2
        %s327 = smul.addr %s326, 8
        %s328 = scalar_lea.vmem %s0, %s327
        %p329 = scmp.lt.s32.totalorder %s25, 1
        %s330 = scalar_select %p329, %s25, 1
        %s331 = smul.addr %s330, 8
        %s332 = scalar_lea.vmem %s1, %s331
        %p333 = scmp.lt.s32.totalorder %s25, 1
        %s334 = scalar_select %p333, %s25, 1
        %s335 = smul.addr %s334, 4
        %s336 = smul.addr %s335, 8
        %s337 = scalar_lea.vmem %s2, %s336
        %p338 = scmp.lt.s32.totalorder %s25, 1
        %s339 = scalar_select %p338, %s25, 1
        %s340 = smul.addr %s339, 2
        %s341 = smul.addr %s340, 8
        %s342 = scalar_lea.vmem %s3, %s341
        %v343 = vld [vmem:[%s4] sm:$0x1f]
        %v344 = vld [vmem:[%s4 + $0x8] sm:$0x1f]
        %v345 = vld [vmem:[%s5] sm:$0x1]
        %v346 = vld [vmem:[%s328] sm:$0x1f]
        %v347 = vld [vmem:[%s328 + $0x8] sm:$0x1f]
        %v348 = vld [vmem:[%s332] sm:$0x1f]
        %v349 = vld [vmem:[%s337] sm:$0xff]
        %v350 = vld [vmem:[%s337 + $0x8] sm:$0xff]
        %v351 = vld [vmem:[%s337 + $0x10] sm:$0x7f]
        %v352 = vld [vmem:[%s337 + $0x18] sm:$0x7f]
        %v353 = vld [vmem:[%s342] sm:$0xff]
        %v354 = vld [vmem:[%s342 + $0x8] sm:$0x7f]
        %v356 = vlaneseq
        %v357 = vshrl.u32 %v356, 7
        %v358 = vsub.s32 0, %v357
        %v359 = vrot.slane %v345, %v358
        %361 = vmatprep.subr.mxu0 0.0
        %362 = vmatpush1.xpose.msra.mxu0 0.0
        %363 = vmatprep.subr.mxu0 0.0
        %364 = vmatpush1.xpose.msra.mxu0 0.0
        %365 = vmatprep.subr.mxu0 0.0
        %366 = vmatpush1.xpose.msra.mxu0 0.0
        %367 = vmatprep.subr.mxu0 0.0
        %368 = vmatpush1.xpose.msra.mxu0 0.0
        %369 = vmatprep.subr.mxu0 0.0
        %370 = vmatpush1.xpose.msra.mxu0 0.0
        %371 = vmatprep.subr.mxu0 0.0
        %372 = vmatpush1.xpose.msra.mxu0 0.0
        %373 = vmatprep.subr.mxu0 0.0
        %374 = vmatpush1.xpose.msra.mxu0 0.0
        %375 = vmatprep.subr.mxu0 0.0
        %376 = vmatpush1.xpose.msra.mxu0 0.0
        %377 = vmatprep.subr.mxu0 0.0
        %378 = vmatpush1.xpose.msra.mxu0 0.0
        %379 = vmatprep.subr.mxu0 0.0
        %380 = vmatpush1.xpose.msra.mxu0 0.0
        %381 = vmatprep.subr.mxu0 0.0
        %382 = vmatpush1.xpose.msra.mxu0 0.0
        %383 = vmatprep.subr.mxu0 0.0
        %384 = vmatpush1.xpose.msra.mxu0 0.0
        %385 = vmatprep.subr.mxu0 0.0
        %386 = vmatpush1.xpose.msra.mxu0 0.0
        %387 = vmatprep.subr.mxu0 0.0
        %388 = vmatpush1.xpose.msra.mxu0 0.0
        %389 = vmatprep.subr.mxu0 0.0
        %390 = vmatpush1.xpose.msra.mxu0 0.0
        %391 = vmatprep.subr.mxu0 %v344
        %392 = vmatpush1.xpose.msra.mxu0 %v343
        %393 = vmatprep.subr.mxu0 0.0
        %394 = vmatpush2.xpose.msra.mxu0 0.0
        %395 = vmatprep.subr.mxu0 0.0
        %396 = vmatpush2.xpose.msra.mxu0 0.0
        %397 = vmatprep.subr.mxu0 0.0
        %398 = vmatpush2.xpose.msra.mxu0 0.0
        %399 = vmatprep.subr.mxu0 0.0
        %400 = vmatpush2.xpose.msra.mxu0 0.0
        %401 = vmatprep.subr.mxu0 0.0
        %402 = vmatpush2.xpose.msra.mxu0 0.0
        %403 = vmatprep.subr.mxu0 0.0
        %404 = vmatpush2.xpose.msra.mxu0 0.0
        %405 = vmatprep.subr.mxu0 0.0
        %406 = vmatpush2.xpose.msra.mxu0 0.0
        %407 = vmatprep.subr.mxu0 0.0
        %408 = vmatpush2.xpose.msra.mxu0 0.0
        %409 = vmatprep.subr.mxu0 0.0
        %410 = vmatpush2.xpose.msra.mxu0 0.0
        %411 = vmatprep.subr.mxu0 0.0
        %412 = vmatpush2.xpose.msra.mxu0 0.0
        %413 = vmatprep.subr.mxu0 0.0
        %414 = vmatpush2.xpose.msra.mxu0 0.0
        %415 = vmatprep.subr.mxu0 0.0
        %416 = vmatpush2.xpose.msra.mxu0 0.0
        %417 = vmatprep.subr.mxu0 0.0
        %418 = vmatpush2.xpose.msra.mxu0 0.0
        %419 = vmatprep.subr.mxu0 0.0
        %420 = vmatpush2.xpose.msra.mxu0 0.0
        %421 = vmatprep.subr.mxu0 0.0
        %422 = vmatpush2.xpose.msra.mxu0 0.0
        %423 = vmatprep.subr.mxu0 0.0
        %424 = vmatpush2.xpose.msra.mxu0 0.0
        %425 = vmatprep.mubr.f32.mxu0 %v350
        %426 = vmatmul.mubr.f32.gmra.mxu0 %v349
        %v427 = vpop.f32.mrf.mxu0
        %v428 = vadd.f32 %v359, %v427
        %v429 = vpop.f32.mrf.mxu0
        %430 = vmatprep.mubr.f32.mxu0 %v352
        %431 = vmatmul.mubr.f32.gmra.mxu0 %v351
        %v432 = vpop.f32.mrf.mxu0
        %v433 = vadd.f32 %v359, %v432
        %v434 = vpop.f32.mrf.mxu0
        %435 = vdwg.mxu0
        %vm436 = vcmask 39936
        %v437 = vsel %vm436, %v428, -inf
        %438 = vmax.xlane.f32.xlu0 %v437
        %v439 = vpop.xlane.xlu0 %438
        %vm440 = vcmask 38912
        %v441 = vsel %vm440, %v433, -inf
        %442 = vmax.xlane.f32.xlu0 %v441
        %v443 = vpop.xlane.xlu0 %442
        %v444 = vsub.f32 %v428, %v439
        %v445 = vsub.f32 %v433, %v443
        %v446 = vmul.f32 %v444, 1.442695
        %v447 = vpow.pop %v446
        %v448 = vmul.f32 %v445, 1.442695
        %v449 = vpow.pop %v448
        %v450 = vsel %vm436, %v447, 0.0
        %451 = vadd.xlane.f32.xlu0 %v450
        %v452 = vpop.xlane.xlu0 %451
        %v453 = vsel %vm440, %v449, 0.0
        %454 = vadd.xlane.f32.xlu0 %v453
        %v455 = vpop.xlane.xlu0 %454
        %v456 = vlog2.pop %v452
        %v457 = vmul.f32 %v456, 0.6931472
        %v458 = vlog2.pop %v455
        %v459 = vmul.f32 %v458, 0.6931472
        %v460 = vsub.f32 %v444, %v457
        %v461 = vsub.f32 %v445, %v459
        %v462 = vmul.f32 %v460, %v353
        %v463 = vmul.f32 %v461, %v354
        %v464 = vsel %vm436, %v462, 0.0
        %v465 = vsel %vm440, %v463, 0.0
        %v466 = vadd.f32 %v464, %v465
        %467 = vadd.xlane.f32.xlu0 %v466
        %v468 = vpop.xlane.xlu0 %467
        %v469 = vrot.slane %v468, 4
        %v470 = vadd.f32 %v468, %v469
        %v471 = vrot.slane %v470, 2
        %v472 = vadd.f32 %v470, %v471
        %v473 = vrot.slane %v472, 1
        %v474 = vadd.f32 %v472, %v473
        %s475 = vtos %v474
        %v476 = vstv %s475
        %v477 = vsub.f32 0.0, %v476
        %v478 = vmul.f32 %v477, 0.06666667
        %v479 = vlaneseq
        %v480 = vand.u32 %v479, 127
        %vm481 = vcmp.eq.f32.partialorder %v428, %v439
        %vm482 = vcmp.eq.f32.partialorder %v433, %v443
        %v483 = vsel %vm481, %v480, 5
        %v484 = vsel %vm482, %v480, 5
        %v485 = vsel %vm436, %v483, 2147483647
        %v486 = vand.u32 %v485, 65535
        %v487 = vshra.s32 %v485, 16
        %v488 = vcvt.s32.f32 %v486
        %v489 = vcvt.s32.f32 %v487
        %490 = vmin.xlane.f32.xlu0 %v489
        %v491 = vpop.xlane.xlu0 %490
        %vm492 = vcmp.eq.f32.partialorder %v489, %v491
        %v493 = vsel %vm492, %v488, inf
        %494 = vmin.xlane.f32.xlu0 %v493
        %v495 = vpop.xlane.xlu0 %494
        %v496 = vcvt.f32.s32 %v495
        %v497 = vcvt.f32.s32 %v491
        %v498 = vshll.u32 %v497, 16
        %v499 = vadd.s32 %v498, %v496
        %v500 = vsel %vm440, %v484, 2147483647
        %v501 = vand.u32 %v500, 65535
        %v502 = vshra.s32 %v500, 16
        %v503 = vcvt.s32.f32 %v501
        %v504 = vcvt.s32.f32 %v502
        %505 = vmin.xlane.f32.xlu0 %v504
        %v506 = vpop.xlane.xlu0 %505
        %vm507 = vcmp.eq.f32.partialorder %v504, %v506
        %v508 = vsel %vm507, %v503, inf
        %509 = vmin.xlane.f32.xlu0 %v508
        %v510 = vpop.xlane.xlu0 %509
        %v511 = vcvt.f32.s32 %v510
        %v512 = vcvt.f32.s32 %v506
        %v513 = vshll.u32 %v512, 16
        %v514 = vadd.s32 %v513, %v511
        %vm515 = vcmp.eq.s32.totalorder %v480, %v499
        %vm516 = vcmp.eq.s32.totalorder %v480, %v514
        %v517 = vsel %vm515, 1, 0
        %v518 = vsel %vm516, 1, 0
        %v519 = vcvt.s32.f32 %v517
        %v520 = vcvt.s32.f32 %v518
        %v521 = vmul.f32 %v519, %v353
        %v522 = vmul.f32 %v520, %v354
        %v523 = vsel %vm436, %v521, 0.0
        %v524 = vsel %vm440, %v522, 0.0
        %v525 = vadd.f32 %v523, %v524
        %526 = vadd.xlane.f32.xlu0 %v525
        %v527 = vpop.xlane.xlu0 %526
        %v528 = vrot.slane %v527, 4
        %v529 = vadd.f32 %v527, %v528
        %v530 = vrot.slane %v529, 2
        %v531 = vadd.f32 %v529, %v530
        %v532 = vrot.slane %v531, 1
        %v533 = vadd.f32 %v531, %v532
        %s534 = vtos %v533
        %vm535 = vcmask 0
        %536 = vst.msk [vmem:[%s317] sm:$0x1] %vm535, %v478
        %v537 = vstv %s534
        %538 = vst.msk [vmem:[%s323] sm:$0x1] %vm535, %v537
        %539 = vmatprep.subr.mxu0 0.0
        %540 = vmatpush1.xpose.msra.mxu0 0.0
        %541 = vmatprep.subr.mxu0 0.0
        %542 = vmatpush1.xpose.msra.mxu0 0.0
        %543 = vmatprep.subr.mxu0 0.0
        %544 = vmatpush1.xpose.msra.mxu0 0.0
        %545 = vmatprep.subr.mxu0 0.0
        %546 = vmatpush1.xpose.msra.mxu0 0.0
        %547 = vmatprep.subr.mxu0 0.0
        %548 = vmatpush1.xpose.msra.mxu0 0.0
        %549 = vmatprep.subr.mxu0 0.0
        %550 = vmatpush1.xpose.msra.mxu0 0.0
        %551 = vmatprep.subr.mxu0 0.0
        %552 = vmatpush1.xpose.msra.mxu0 0.0
        %553 = vmatprep.subr.mxu0 0.0
        %554 = vmatpush1.xpose.msra.mxu0 0.0
        %555 = vmatprep.subr.mxu0 0.0
        %556 = vmatpush1.xpose.msra.mxu0 0.0
        %557 = vmatprep.subr.mxu0 0.0
        %558 = vmatpush1.xpose.msra.mxu0 0.0
        %559 = vmatprep.subr.mxu0 0.0
        %560 = vmatpush1.xpose.msra.mxu0 0.0
        %561 = vmatprep.subr.mxu0 0.0
        %562 = vmatpush1.xpose.msra.mxu0 0.0
        %563 = vmatprep.subr.mxu0 0.0
        %564 = vmatpush1.xpose.msra.mxu0 0.0
        %565 = vmatprep.subr.mxu0 0.0
        %566 = vmatpush1.xpose.msra.mxu0 0.0
        %567 = vmatprep.subr.mxu0 0.0
        %568 = vmatpush1.xpose.msra.mxu0 0.0
        %569 = vmatprep.subr.mxu0 %v344
        %570 = vmatpush1.xpose.msra.mxu0 %v343
        %571 = vmatprep.subr.mxu0 0.0
        %572 = vmatpush2.xpose.msra.mxu0 0.0
        %573 = vmatprep.subr.mxu0 0.0
        %574 = vmatpush2.xpose.msra.mxu0 0.0
        %575 = vmatprep.subr.mxu0 0.0
        %576 = vmatpush2.xpose.msra.mxu0 0.0
        %577 = vmatprep.subr.mxu0 0.0
        %578 = vmatpush2.xpose.msra.mxu0 0.0
        %579 = vmatprep.subr.mxu0 0.0
        %580 = vmatpush2.xpose.msra.mxu0 0.0
        %581 = vmatprep.subr.mxu0 0.0
        %582 = vmatpush2.xpose.msra.mxu0 0.0
        %583 = vmatprep.subr.mxu0 0.0
        %584 = vmatpush2.xpose.msra.mxu0 0.0
        %585 = vmatprep.subr.mxu0 0.0
        %586 = vmatpush2.xpose.msra.mxu0 0.0
        %587 = vmatprep.subr.mxu0 0.0
        %588 = vmatpush2.xpose.msra.mxu0 0.0
        %589 = vmatprep.subr.mxu0 0.0
        %590 = vmatpush2.xpose.msra.mxu0 0.0
        %591 = vmatprep.subr.mxu0 0.0
        %592 = vmatpush2.xpose.msra.mxu0 0.0
        %593 = vmatprep.subr.mxu0 0.0
        %594 = vmatpush2.xpose.msra.mxu0 0.0
        %595 = vmatprep.subr.mxu0 0.0
        %596 = vmatpush2.xpose.msra.mxu0 0.0
        %597 = vmatprep.subr.mxu0 0.0
        %598 = vmatpush2.xpose.msra.mxu0 0.0
        %599 = vmatprep.subr.mxu0 0.0
        %600 = vmatpush2.xpose.msra.mxu0 0.0
        %601 = vmatprep.subr.mxu0 0.0
        %602 = vmatpush2.xpose.msra.mxu0 0.0
        %603 = vmatprep.mubr.f32.mxu0 %v347
        %604 = vmatmul.mubr.f32.gmra.mxu0 %v346
        %v605 = vpop.f32.mrf.mxu0
        %v606 = vadd.f32 %v359, %v605
        %v607 = vpop.f32.mrf.mxu0
        %608 = vdwg.mxu0
        %vm609 = vcmask 36864
        %v610 = vsel %vm609, %v606, -inf
        %611 = vmax.xlane.f32.xlu0 %v610
        %v612 = vpop.xlane.xlu0 %611
        %v613 = vsub.f32 %v606, %v612
        %v614 = vmul.f32 %v613, 1.442695
        %v615 = vpow.pop %v614
        %v616 = vsel %vm609, %v615, 0.0
        %617 = vadd.xlane.f32.xlu0 %v616
        %v618 = vpop.xlane.xlu0 %617
        %v619 = vrcp.pop %v618
        %v620 = vmul.f32 %v615, %v619
        %v621 = vsub.f32 %v620, %v348
        %v622 = vmul.f32 %v621, 0.2
        %623 = vxpose.xlu0.b32.start [1/16] %v622, 128
        %624 = vxpose.xlu0.b32.cont [2/16] 0.0, 128
        %625 = vxpose.xlu0.b32.cont [3/16] 0.0, 128
        %626 = vxpose.xlu0.b32.cont [4/16] 0.0, 128
        %627 = vxpose.xlu0.b32.cont [5/16] 0.0, 128
        %628 = vxpose.xlu0.b32.cont [6/16] 0.0, 128
        %629 = vxpose.xlu0.b32.cont [7/16] 0.0, 128
        %630 = vxpose.xlu0.b32.cont [8/16] 0.0, 128
        %631 = vxpose.xlu0.b32.cont [9/16] 0.0, 128
        %632 = vxpose.xlu0.b32.cont [10/16] 0.0, 128
        %633 = vxpose.xlu0.b32.cont [11/16] 0.0, 128
        %634 = vxpose.xlu0.b32.cont [12/16] 0.0, 128
        %635 = vxpose.xlu0.b32.cont [13/16] 0.0, 128
        %636 = vxpose.xlu0.b32.cont [14/16] 0.0, 128
        %637 = vxpose.xlu0.b32.cont [15/16] 0.0, 128
        %638 = vxpose.xlu0.b32.end [16/16] 0.0, 128
        %v639 = vpop.trf.xlu0
        %v640 = vpop.trf.xlu0
        %v641 = vpop.trf.xlu0
        %v642 = vpop.trf.xlu0
        %v643 = vpop.trf.xlu0
        %v644 = vpop.trf.xlu0
        %v645 = vpop.trf.xlu0
        %v646 = vpop.trf.xlu0
        %v647 = vpop.trf.xlu0
        %v648 = vpop.trf.xlu0
        %v649 = vpop.trf.xlu0
        %v650 = vpop.trf.xlu0
        %v651 = vpop.trf.xlu0
        %v652 = vpop.trf.xlu0
        %v653 = vpop.trf.xlu0
        %v654 = vpop.trf.xlu0
        %v656 = vsel %vm436, %v639, 0
        %vm658 = vcmask 1044480
        %v660 = vsel %vm658, %v346, 0
        %v663 = vsel %vm658, %v347, 0
        %665 = vmatprep.subr.mxu0 0.0
        %666 = vmatpush1.msra.mxu0 0.0
        %667 = vmatprep.subr.mxu0 0.0
        %668 = vmatpush1.msra.mxu0 0.0
        %669 = vmatprep.subr.mxu0 0.0
        %670 = vmatpush1.msra.mxu0 0.0
        %671 = vmatprep.subr.mxu0 0.0
        %672 = vmatpush1.msra.mxu0 0.0
        %673 = vmatprep.subr.mxu0 0.0
        %674 = vmatpush1.msra.mxu0 0.0
        %675 = vmatprep.subr.mxu0 0.0
        %676 = vmatpush1.msra.mxu0 0.0
        %677 = vmatprep.subr.mxu0 0.0
        %678 = vmatpush1.msra.mxu0 0.0
        %679 = vmatprep.subr.mxu0 0.0
        %680 = vmatpush1.msra.mxu0 0.0
        %681 = vmatprep.subr.mxu0 0.0
        %682 = vmatpush1.msra.mxu0 0.0
        %683 = vmatprep.subr.mxu0 0.0
        %684 = vmatpush1.msra.mxu0 0.0
        %685 = vmatprep.subr.mxu0 0.0
        %686 = vmatpush1.msra.mxu0 0.0
        %687 = vmatprep.subr.mxu0 0.0
        %688 = vmatpush1.msra.mxu0 0.0
        %689 = vmatprep.subr.mxu0 0.0
        %690 = vmatpush1.msra.mxu0 0.0
        %691 = vmatprep.subr.mxu0 0.0
        %692 = vmatpush1.msra.mxu0 0.0
        %693 = vmatprep.subr.mxu0 0.0
        %694 = vmatpush1.msra.mxu0 0.0
        %695 = vmatprep.subr.mxu0 %v663
        %696 = vmatpush1.msra.mxu0 %v660
        %697 = vmatprep.subr.mxu0 0.0
        %698 = vmatpush2.msra.mxu0 0.0
        %699 = vmatprep.subr.mxu0 0.0
        %700 = vmatpush2.msra.mxu0 0.0
        %701 = vmatprep.subr.mxu0 0.0
        %702 = vmatpush2.msra.mxu0 0.0
        %703 = vmatprep.subr.mxu0 0.0
        %704 = vmatpush2.msra.mxu0 0.0
        %705 = vmatprep.subr.mxu0 0.0
        %706 = vmatpush2.msra.mxu0 0.0
        %707 = vmatprep.subr.mxu0 0.0
        %708 = vmatpush2.msra.mxu0 0.0
        %709 = vmatprep.subr.mxu0 0.0
        %710 = vmatpush2.msra.mxu0 0.0
        %711 = vmatprep.subr.mxu0 0.0
        %712 = vmatpush2.msra.mxu0 0.0
        %713 = vmatprep.subr.mxu0 0.0
        %714 = vmatpush2.msra.mxu0 0.0
        %715 = vmatprep.subr.mxu0 0.0
        %716 = vmatpush2.msra.mxu0 0.0
        %717 = vmatprep.subr.mxu0 0.0
        %718 = vmatpush2.msra.mxu0 0.0
        %719 = vmatprep.subr.mxu0 0.0
        %720 = vmatpush2.msra.mxu0 0.0
        %721 = vmatprep.subr.mxu0 0.0
        %722 = vmatpush2.msra.mxu0 0.0
        %723 = vmatprep.subr.mxu0 0.0
        %724 = vmatpush2.msra.mxu0 0.0
        %725 = vmatprep.subr.mxu0 0.0
        %726 = vmatpush2.msra.mxu0 0.0
        %727 = vmatprep.subr.mxu0 0.0
        %728 = vmatpush2.msra.mxu0 0.0
        %729 = vmatprep.mubr.f32.mxu0 0.0
        %730 = vmatmul.mubr.f32.gmra.mxu0 %v656
        %v731 = vpop.f32.mrf.mxu0
        %v732 = vadd.f32 0.0, %v731
        %v733 = vpop.f32.mrf.mxu0
        %v734 = vadd.f32 0.0, %v733
        %735 = vdwg.mxu0
        %v736 = vsel %vm609, %v622, 0.0
        %v737 = vrot.slane %v736, 4
        %v738 = vadd.f32 %v736, %v737
        %v739 = vrot.slane %v738, 2
        %v740 = vadd.f32 %v738, %v739
        %v741 = vrot.slane %v740, 1
        %v742 = vadd.f32 %v740, %v741
        %v743 = vmul.f32 %v732, 0.4
        %v744 = vmul.f32 %v734, 0.4
        %v745 = vsub.f32 %v343, %v743
        %v746 = vsub.f32 %v344, %v744
        %v747 = vmul.f32 %v742, 0.4
        %v748 = vsub.f32 %v345, %v747
        %v750 = vlaneseq
        %v751 = vshrl.u32 %v750, 7
        %v752 = vsub.s32 0, %v751
        %v753 = vrot.slane %v748, %v752
        %755 = vmatprep.subr.mxu0 0.0
        %756 = vmatpush1.xpose.msra.mxu0 0.0
        %757 = vmatprep.subr.mxu0 0.0
        %758 = vmatpush1.xpose.msra.mxu0 0.0
        %759 = vmatprep.subr.mxu0 0.0
        %760 = vmatpush1.xpose.msra.mxu0 0.0
        %761 = vmatprep.subr.mxu0 0.0
        %762 = vmatpush1.xpose.msra.mxu0 0.0
        %763 = vmatprep.subr.mxu0 0.0
        %764 = vmatpush1.xpose.msra.mxu0 0.0
        %765 = vmatprep.subr.mxu0 0.0
        %766 = vmatpush1.xpose.msra.mxu0 0.0
        %767 = vmatprep.subr.mxu0 0.0
        %768 = vmatpush1.xpose.msra.mxu0 0.0
        %769 = vmatprep.subr.mxu0 0.0
        %770 = vmatpush1.xpose.msra.mxu0 0.0
        %771 = vmatprep.subr.mxu0 0.0
        %772 = vmatpush1.xpose.msra.mxu0 0.0
        %773 = vmatprep.subr.mxu0 0.0
        %774 = vmatpush1.xpose.msra.mxu0 0.0
        %775 = vmatprep.subr.mxu0 0.0
        %776 = vmatpush1.xpose.msra.mxu0 0.0
        %777 = vmatprep.subr.mxu0 0.0
        %778 = vmatpush1.xpose.msra.mxu0 0.0
        %779 = vmatprep.subr.mxu0 0.0
        %780 = vmatpush1.xpose.msra.mxu0 0.0
        %781 = vmatprep.subr.mxu0 0.0
        %782 = vmatpush1.xpose.msra.mxu0 0.0
        %783 = vmatprep.subr.mxu0 0.0
        %784 = vmatpush1.xpose.msra.mxu0 0.0
        %785 = vmatprep.subr.mxu0 %v746
        %786 = vmatpush1.xpose.msra.mxu0 %v745
        %787 = vmatprep.subr.mxu0 0.0
        %788 = vmatpush2.xpose.msra.mxu0 0.0
        %789 = vmatprep.subr.mxu0 0.0
        %790 = vmatpush2.xpose.msra.mxu0 0.0
        %791 = vmatprep.subr.mxu0 0.0
        %792 = vmatpush2.xpose.msra.mxu0 0.0
        %793 = vmatprep.subr.mxu0 0.0
        %794 = vmatpush2.xpose.msra.mxu0 0.0
        %795 = vmatprep.subr.mxu0 0.0
        %796 = vmatpush2.xpose.msra.mxu0 0.0
        %797 = vmatprep.subr.mxu0 0.0
        %798 = vmatpush2.xpose.msra.mxu0 0.0
        %799 = vmatprep.subr.mxu0 0.0
        %800 = vmatpush2.xpose.msra.mxu0 0.0
        %801 = vmatprep.subr.mxu0 0.0
        %802 = vmatpush2.xpose.msra.mxu0 0.0
        %803 = vmatprep.subr.mxu0 0.0
        %804 = vmatpush2.xpose.msra.mxu0 0.0
        %805 = vmatprep.subr.mxu0 0.0
        %806 = vmatpush2.xpose.msra.mxu0 0.0
        %807 = vmatprep.subr.mxu0 0.0
        %808 = vmatpush2.xpose.msra.mxu0 0.0
        %809 = vmatprep.subr.mxu0 0.0
        %810 = vmatpush2.xpose.msra.mxu0 0.0
        %811 = vmatprep.subr.mxu0 0.0
        %812 = vmatpush2.xpose.msra.mxu0 0.0
        %813 = vmatprep.subr.mxu0 0.0
        %814 = vmatpush2.xpose.msra.mxu0 0.0
        %815 = vmatprep.subr.mxu0 0.0
        %816 = vmatpush2.xpose.msra.mxu0 0.0
        %817 = vmatprep.subr.mxu0 0.0
        %818 = vmatpush2.xpose.msra.mxu0 0.0
        %819 = vmatprep.mubr.f32.mxu0 %v350
        %820 = vmatmul.mubr.f32.gmra.mxu0 %v349
        %v821 = vpop.f32.mrf.mxu0
        %v822 = vadd.f32 %v753, %v821
        %v823 = vpop.f32.mrf.mxu0
        %824 = vmatprep.mubr.f32.mxu0 %v352
        %825 = vmatmul.mubr.f32.gmra.mxu0 %v351
        %v826 = vpop.f32.mrf.mxu0
        %v827 = vadd.f32 %v753, %v826
        %v828 = vpop.f32.mrf.mxu0
        %829 = vdwg.mxu0
        %v830 = vsel %vm436, %v822, -inf
        %831 = vmax.xlane.f32.xlu0 %v830
        %v832 = vpop.xlane.xlu0 %831
        %v833 = vsel %vm440, %v827, -inf
        %834 = vmax.xlane.f32.xlu0 %v833
        %v835 = vpop.xlane.xlu0 %834
        %v836 = vsub.f32 %v822, %v832
        %v837 = vsub.f32 %v827, %v835
        %v838 = vmul.f32 %v836, 1.442695
        %v839 = vpow.pop %v838
        %v840 = vmul.f32 %v837, 1.442695
        %v841 = vpow.pop %v840
        %v842 = vsel %vm436, %v839, 0.0
        %843 = vadd.xlane.f32.xlu0 %v842
        %v844 = vpop.xlane.xlu0 %843
        %v845 = vsel %vm440, %v841, 0.0
        %846 = vadd.xlane.f32.xlu0 %v845
        %v847 = vpop.xlane.xlu0 %846
        %v848 = vlog2.pop %v844
        %v849 = vmul.f32 %v848, 0.6931472
        %v850 = vlog2.pop %v847
        %v851 = vmul.f32 %v850, 0.6931472
        %v852 = vsub.f32 %v836, %v849
        %v853 = vsub.f32 %v837, %v851
        %v854 = vmul.f32 %v852, %v353
        %v855 = vmul.f32 %v853, %v354
        %v856 = vsel %vm436, %v854, 0.0
        %v857 = vsel %vm440, %v855, 0.0
        %v858 = vadd.f32 %v856, %v857
        %859 = vadd.xlane.f32.xlu0 %v858
        %v860 = vpop.xlane.xlu0 %859
        %v861 = vrot.slane %v860, 4
        %v862 = vadd.f32 %v860, %v861
        %v863 = vrot.slane %v862, 2
        %v864 = vadd.f32 %v862, %v863
        %v865 = vrot.slane %v864, 1
        %v866 = vadd.f32 %v864, %v865
        %s867 = vtos %v866
        %v868 = vstv %s867
        %v869 = vsub.f32 0.0, %v868
        %v870 = vmul.f32 %v869, 0.06666667
        %vm871 = vcmp.eq.f32.partialorder %v822, %v832
        %vm872 = vcmp.eq.f32.partialorder %v827, %v835
        %v873 = vsel %vm871, %v480, 5
        %v874 = vsel %vm872, %v480, 5
        %v875 = vsel %vm436, %v873, 2147483647
        %v876 = vand.u32 %v875, 65535
        %v877 = vshra.s32 %v875, 16
        %v878 = vcvt.s32.f32 %v876
        %v879 = vcvt.s32.f32 %v877
        %880 = vmin.xlane.f32.xlu0 %v879
        %v881 = vpop.xlane.xlu0 %880
        %vm882 = vcmp.eq.f32.partialorder %v879, %v881
        %v883 = vsel %vm882, %v878, inf
        %884 = vmin.xlane.f32.xlu0 %v883
        %v885 = vpop.xlane.xlu0 %884
        %v886 = vcvt.f32.s32 %v885
        %v887 = vcvt.f32.s32 %v881
        %v888 = vshll.u32 %v887, 16
        %v889 = vadd.s32 %v888, %v886
        %v890 = vsel %vm440, %v874, 2147483647
        %v891 = vand.u32 %v890, 65535
        %v892 = vshra.s32 %v890, 16
        %v893 = vcvt.s32.f32 %v891
        %v894 = vcvt.s32.f32 %v892
        %895 = vmin.xlane.f32.xlu0 %v894
        %v896 = vpop.xlane.xlu0 %895
        %vm897 = vcmp.eq.f32.partialorder %v894, %v896
        %v898 = vsel %vm897, %v893, inf
        %899 = vmin.xlane.f32.xlu0 %v898
        %v900 = vpop.xlane.xlu0 %899
        %v901 = vcvt.f32.s32 %v900
        %v902 = vcvt.f32.s32 %v896
        %v903 = vshll.u32 %v902, 16
        %v904 = vadd.s32 %v903, %v901
        %vm905 = vcmp.eq.s32.totalorder %v480, %v889
        %vm906 = vcmp.eq.s32.totalorder %v480, %v904
        %v907 = vsel %vm905, 1, 0
        %v908 = vsel %vm906, 1, 0
        %v909 = vcvt.s32.f32 %v907
        %v910 = vcvt.s32.f32 %v908
        %v911 = vmul.f32 %v909, %v353
        %v912 = vmul.f32 %v910, %v354
        %v913 = vsel %vm436, %v911, 0.0
        %v914 = vsel %vm440, %v912, 0.0
        %v915 = vadd.f32 %v913, %v914
        %916 = vadd.xlane.f32.xlu0 %v915
        %v917 = vpop.xlane.xlu0 %916
        %v918 = vrot.slane %v917, 4
        %v919 = vadd.f32 %v917, %v918
        %v920 = vrot.slane %v919, 2
        %v921 = vadd.f32 %v919, %v920
        %v922 = vrot.slane %v921, 1
        %v923 = vadd.f32 %v921, %v922
        %s924 = vtos %v923
        %vm925 = vcmask 8200
        %926 = vst.msk [vmem:[%s317] sm:$0x1] %vm925, %v870
        %v927 = vstv %s924
        %928 = vst.msk [vmem:[%s323] sm:$0x1] %vm925, %v927
        %929 = vmatprep.subr.mxu0 0.0
        %930 = vmatpush1.xpose.msra.mxu0 0.0
        %931 = vmatprep.subr.mxu0 0.0
        %932 = vmatpush1.xpose.msra.mxu0 0.0
        %933 = vmatprep.subr.mxu0 0.0
        %934 = vmatpush1.xpose.msra.mxu0 0.0
        %935 = vmatprep.subr.mxu0 0.0
        %936 = vmatpush1.xpose.msra.mxu0 0.0
        %937 = vmatprep.subr.mxu0 0.0
        %938 = vmatpush1.xpose.msra.mxu0 0.0
        %939 = vmatprep.subr.mxu0 0.0
        %940 = vmatpush1.xpose.msra.mxu0 0.0
        %941 = vmatprep.subr.mxu0 0.0
        %942 = vmatpush1.xpose.msra.mxu0 0.0
        %943 = vmatprep.subr.mxu0 0.0
        %944 = vmatpush1.xpose.msra.mxu0 0.0
        %945 = vmatprep.subr.mxu0 0.0
        %946 = vmatpush1.xpose.msra.mxu0 0.0
        %947 = vmatprep.subr.mxu0 0.0
        %948 = vmatpush1.xpose.msra.mxu0 0.0
        %949 = vmatprep.subr.mxu0 0.0
        %950 = vmatpush1.xpose.msra.mxu0 0.0
        %951 = vmatprep.subr.mxu0 0.0
        %952 = vmatpush1.xpose.msra.mxu0 0.0
        %953 = vmatprep.subr.mxu0 0.0
        %954 = vmatpush1.xpose.msra.mxu0 0.0
        %955 = vmatprep.subr.mxu0 0.0
        %956 = vmatpush1.xpose.msra.mxu0 0.0
        %957 = vmatprep.subr.mxu0 0.0
        %958 = vmatpush1.xpose.msra.mxu0 0.0
        %959 = vmatprep.subr.mxu0 %v746
        %960 = vmatpush1.xpose.msra.mxu0 %v745
        %961 = vmatprep.subr.mxu0 0.0
        %962 = vmatpush2.xpose.msra.mxu0 0.0
        %963 = vmatprep.subr.mxu0 0.0
        %964 = vmatpush2.xpose.msra.mxu0 0.0
        %965 = vmatprep.subr.mxu0 0.0
        %966 = vmatpush2.xpose.msra.mxu0 0.0
        %967 = vmatprep.subr.mxu0 0.0
        %968 = vmatpush2.xpose.msra.mxu0 0.0
        %969 = vmatprep.subr.mxu0 0.0
        %970 = vmatpush2.xpose.msra.mxu0 0.0
        %971 = vmatprep.subr.mxu0 0.0
        %972 = vmatpush2.xpose.msra.mxu0 0.0
        %973 = vmatprep.subr.mxu0 0.0
        %974 = vmatpush2.xpose.msra.mxu0 0.0
        %975 = vmatprep.subr.mxu0 0.0
        %976 = vmatpush2.xpose.msra.mxu0 0.0
        %977 = vmatprep.subr.mxu0 0.0
        %978 = vmatpush2.xpose.msra.mxu0 0.0
        %979 = vmatprep.subr.mxu0 0.0
        %980 = vmatpush2.xpose.msra.mxu0 0.0
        %981 = vmatprep.subr.mxu0 0.0
        %982 = vmatpush2.xpose.msra.mxu0 0.0
        %983 = vmatprep.subr.mxu0 0.0
        %984 = vmatpush2.xpose.msra.mxu0 0.0
        %985 = vmatprep.subr.mxu0 0.0
        %986 = vmatpush2.xpose.msra.mxu0 0.0
        %987 = vmatprep.subr.mxu0 0.0
        %988 = vmatpush2.xpose.msra.mxu0 0.0
        %989 = vmatprep.subr.mxu0 0.0
        %990 = vmatpush2.xpose.msra.mxu0 0.0
        %991 = vmatprep.subr.mxu0 0.0
        %992 = vmatpush2.xpose.msra.mxu0 0.0
        %993 = vmatprep.mubr.f32.mxu0 %v347
        %994 = vmatmul.mubr.f32.gmra.mxu0 %v346
        %v995 = vpop.f32.mrf.mxu0
        %v996 = vadd.f32 %v753, %v995
        %v997 = vpop.f32.mrf.mxu0
        %998 = vdwg.mxu0
        %v999 = vsel %vm609, %v996, -inf
        %1000 = vmax.xlane.f32.xlu0 %v999
        %v1001 = vpop.xlane.xlu0 %1000
        %v1002 = vsub.f32 %v996, %v1001
        %v1003 = vmul.f32 %v1002, 1.442695
        %v1004 = vpow.pop %v1003
        %v1005 = vsel %vm609, %v1004, 0.0
        %1006 = vadd.xlane.f32.xlu0 %v1005
        %v1007 = vpop.xlane.xlu0 %1006
        %v1008 = vrcp.pop %v1007
        %v1009 = vmul.f32 %v1004, %v1008
        %v1010 = vsub.f32 %v1009, %v348
        %v1011 = vmul.f32 %v1010, 0.2
        %1012 = vxpose.xlu0.b32.start [1/16] %v1011, 128
        %1013 = vxpose.xlu0.b32.cont [2/16] 0.0, 128
        %1014 = vxpose.xlu0.b32.cont [3/16] 0.0, 128
        %1015 = vxpose.xlu0.b32.cont [4/16] 0.0, 128
        %1016 = vxpose.xlu0.b32.cont [5/16] 0.0, 128
        %1017 = vxpose.xlu0.b32.cont [6/16] 0.0, 128
        %1018 = vxpose.xlu0.b32.cont [7/16] 0.0, 128
        %1019 = vxpose.xlu0.b32.cont [8/16] 0.0, 128
        %1020 = vxpose.xlu0.b32.cont [9/16] 0.0, 128
        %1021 = vxpose.xlu0.b32.cont [10/16] 0.0, 128
        %1022 = vxpose.xlu0.b32.cont [11/16] 0.0, 128
        %1023 = vxpose.xlu0.b32.cont [12/16] 0.0, 128
        %1024 = vxpose.xlu0.b32.cont [13/16] 0.0, 128
        %1025 = vxpose.xlu0.b32.cont [14/16] 0.0, 128
        %1026 = vxpose.xlu0.b32.cont [15/16] 0.0, 128
        %1027 = vxpose.xlu0.b32.end [16/16] 0.0, 128
        %v1028 = vpop.trf.xlu0
        %v1029 = vpop.trf.xlu0
        %v1030 = vpop.trf.xlu0
        %v1031 = vpop.trf.xlu0
        %v1032 = vpop.trf.xlu0
        %v1033 = vpop.trf.xlu0
        %v1034 = vpop.trf.xlu0
        %v1035 = vpop.trf.xlu0
        %v1036 = vpop.trf.xlu0
        %v1037 = vpop.trf.xlu0
        %v1038 = vpop.trf.xlu0
        %v1039 = vpop.trf.xlu0
        %v1040 = vpop.trf.xlu0
        %v1041 = vpop.trf.xlu0
        %v1042 = vpop.trf.xlu0
        %v1043 = vpop.trf.xlu0
        %v1045 = vsel %vm436, %v1028, 0
        %1047 = vmatprep.subr.mxu0 0.0
        %1048 = vmatpush1.msra.mxu0 0.0
        %1049 = vmatprep.subr.mxu0 0.0
        %1050 = vmatpush1.msra.mxu0 0.0
        %1051 = vmatprep.subr.mxu0 0.0
        %1052 = vmatpush1.msra.mxu0 0.0
        %1053 = vmatprep.subr.mxu0 0.0
        %1054 = vmatpush1.msra.mxu0 0.0
        %1055 = vmatprep.subr.mxu0 0.0
        %1056 = vmatpush1.msra.mxu0 0.0
        %1057 = vmatprep.subr.mxu0 0.0
        %1058 = vmatpush1.msra.mxu0 0.0
        %1059 = vmatprep.subr.mxu0 0.0
        %1060 = vmatpush1.msra.mxu0 0.0
        %1061 = vmatprep.subr.mxu0 0.0
        %1062 = vmatpush1.msra.mxu0 0.0
        %1063 = vmatprep.subr.mxu0 0.0
        %1064 = vmatpush1.msra.mxu0 0.0
        %1065 = vmatprep.subr.mxu0 0.0
        %1066 = vmatpush1.msra.mxu0 0.0
        %1067 = vmatprep.subr.mxu0 0.0
        %1068 = vmatpush1.msra.mxu0 0.0
        %1069 = vmatprep.subr.mxu0 0.0
        %1070 = vmatpush1.msra.mxu0 0.0
        %1071 = vmatprep.subr.mxu0 0.0
        %1072 = vmatpush1.msra.mxu0 0.0
        %1073 = vmatprep.subr.mxu0 0.0
        %1074 = vmatpush1.msra.mxu0 0.0
        %1075 = vmatprep.subr.mxu0 0.0
        %1076 = vmatpush1.msra.mxu0 0.0
        %1077 = vmatprep.subr.mxu0 %v663
        %1078 = vmatpush1.msra.mxu0 %v660
        %1079 = vmatprep.subr.mxu0 0.0
        %1080 = vmatpush2.msra.mxu0 0.0
        %1081 = vmatprep.subr.mxu0 0.0
        %1082 = vmatpush2.msra.mxu0 0.0
        %1083 = vmatprep.subr.mxu0 0.0
        %1084 = vmatpush2.msra.mxu0 0.0
        %1085 = vmatprep.subr.mxu0 0.0
        %1086 = vmatpush2.msra.mxu0 0.0
        %1087 = vmatprep.subr.mxu0 0.0
        %1088 = vmatpush2.msra.mxu0 0.0
        %1089 = vmatprep.subr.mxu0 0.0
        %1090 = vmatpush2.msra.mxu0 0.0
        %1091 = vmatprep.subr.mxu0 0.0
        %1092 = vmatpush2.msra.mxu0 0.0
        %1093 = vmatprep.subr.mxu0 0.0
        %1094 = vmatpush2.msra.mxu0 0.0
        %1095 = vmatprep.subr.mxu0 0.0
        %1096 = vmatpush2.msra.mxu0 0.0
        %1097 = vmatprep.subr.mxu0 0.0
        %1098 = vmatpush2.msra.mxu0 0.0
        %1099 = vmatprep.subr.mxu0 0.0
        %1100 = vmatpush2.msra.mxu0 0.0
        %1101 = vmatprep.subr.mxu0 0.0
        %1102 = vmatpush2.msra.mxu0 0.0
        %1103 = vmatprep.subr.mxu0 0.0
        %1104 = vmatpush2.msra.mxu0 0.0
        %1105 = vmatprep.subr.mxu0 0.0
        %1106 = vmatpush2.msra.mxu0 0.0
        %1107 = vmatprep.subr.mxu0 0.0
        %1108 = vmatpush2.msra.mxu0 0.0
        %1109 = vmatprep.subr.mxu0 0.0
        %1110 = vmatpush2.msra.mxu0 0.0
        %1111 = vmatprep.mubr.f32.mxu0 0.0
        %1112 = vmatmul.mubr.f32.gmra.mxu0 %v1045
        %v1113 = vpop.f32.mrf.mxu0
        %v1114 = vadd.f32 0.0, %v1113
        %v1115 = vpop.f32.mrf.mxu0
        %v1116 = vadd.f32 0.0, %v1115
        %1117 = vdwg.mxu0
        %v1118 = vsel %vm609, %v1011, 0.0
        %v1119 = vrot.slane %v1118, 4
        %v1120 = vadd.f32 %v1118, %v1119
        %v1121 = vrot.slane %v1120, 2
        %v1122 = vadd.f32 %v1120, %v1121
        %v1123 = vrot.slane %v1122, 1
        %v1124 = vadd.f32 %v1122, %v1123
        %v1125 = vmul.f32 %v1114, 0.4
        %v1126 = vmul.f32 %v1116, 0.4
        %v1127 = vsub.f32 %v745, %v1125
        %v1128 = vsub.f32 %v746, %v1126
        %v1129 = vmul.f32 %v1124, 0.4
        %v1130 = vsub.f32 %v748, %v1129
        %v1132 = vlaneseq
        %v1133 = vshrl.u32 %v1132, 7
        %v1134 = vsub.s32 0, %v1133
        %v1135 = vrot.slane %v1130, %v1134
        %1137 = vmatprep.subr.mxu0 0.0
        %1138 = vmatpush1.xpose.msra.mxu0 0.0
        %1139 = vmatprep.subr.mxu0 0.0
        %1140 = vmatpush1.xpose.msra.mxu0 0.0
        %1141 = vmatprep.subr.mxu0 0.0
        %1142 = vmatpush1.xpose.msra.mxu0 0.0
        %1143 = vmatprep.subr.mxu0 0.0
        %1144 = vmatpush1.xpose.msra.mxu0 0.0
        %1145 = vmatprep.subr.mxu0 0.0
        %1146 = vmatpush1.xpose.msra.mxu0 0.0
        %1147 = vmatprep.subr.mxu0 0.0
        %1148 = vmatpush1.xpose.msra.mxu0 0.0
        %1149 = vmatprep.subr.mxu0 0.0
        %1150 = vmatpush1.xpose.msra.mxu0 0.0
        %1151 = vmatprep.subr.mxu0 0.0
        %1152 = vmatpush1.xpose.msra.mxu0 0.0
        %1153 = vmatprep.subr.mxu0 0.0
        %1154 = vmatpush1.xpose.msra.mxu0 0.0
        %1155 = vmatprep.subr.mxu0 0.0
        %1156 = vmatpush1.xpose.msra.mxu0 0.0
        %1157 = vmatprep.subr.mxu0 0.0
        %1158 = vmatpush1.xpose.msra.mxu0 0.0
        %1159 = vmatprep.subr.mxu0 0.0
        %1160 = vmatpush1.xpose.msra.mxu0 0.0
        %1161 = vmatprep.subr.mxu0 0.0
        %1162 = vmatpush1.xpose.msra.mxu0 0.0
        %1163 = vmatprep.subr.mxu0 0.0
        %1164 = vmatpush1.xpose.msra.mxu0 0.0
        %1165 = vmatprep.subr.mxu0 0.0
        %1166 = vmatpush1.xpose.msra.mxu0 0.0
        %1167 = vmatprep.subr.mxu0 %v1128
        %1168 = vmatpush1.xpose.msra.mxu0 %v1127
        %1169 = vmatprep.subr.mxu0 0.0
        %1170 = vmatpush2.xpose.msra.mxu0 0.0
        %1171 = vmatprep.subr.mxu0 0.0
        %1172 = vmatpush2.xpose.msra.mxu0 0.0
        %1173 = vmatprep.subr.mxu0 0.0
        %1174 = vmatpush2.xpose.msra.mxu0 0.0
        %1175 = vmatprep.subr.mxu0 0.0
        %1176 = vmatpush2.xpose.msra.mxu0 0.0
        %1177 = vmatprep.subr.mxu0 0.0
        %1178 = vmatpush2.xpose.msra.mxu0 0.0
        %1179 = vmatprep.subr.mxu0 0.0
        %1180 = vmatpush2.xpose.msra.mxu0 0.0
        %1181 = vmatprep.subr.mxu0 0.0
        %1182 = vmatpush2.xpose.msra.mxu0 0.0
        %1183 = vmatprep.subr.mxu0 0.0
        %1184 = vmatpush2.xpose.msra.mxu0 0.0
        %1185 = vmatprep.subr.mxu0 0.0
        %1186 = vmatpush2.xpose.msra.mxu0 0.0
        %1187 = vmatprep.subr.mxu0 0.0
        %1188 = vmatpush2.xpose.msra.mxu0 0.0
        %1189 = vmatprep.subr.mxu0 0.0
        %1190 = vmatpush2.xpose.msra.mxu0 0.0
        %1191 = vmatprep.subr.mxu0 0.0
        %1192 = vmatpush2.xpose.msra.mxu0 0.0
        %1193 = vmatprep.subr.mxu0 0.0
        %1194 = vmatpush2.xpose.msra.mxu0 0.0
        %1195 = vmatprep.subr.mxu0 0.0
        %1196 = vmatpush2.xpose.msra.mxu0 0.0
        %1197 = vmatprep.subr.mxu0 0.0
        %1198 = vmatpush2.xpose.msra.mxu0 0.0
        %1199 = vmatprep.subr.mxu0 0.0
        %1200 = vmatpush2.xpose.msra.mxu0 0.0
        %1201 = vmatprep.mubr.f32.mxu0 %v350
        %1202 = vmatmul.mubr.f32.gmra.mxu0 %v349
        %v1203 = vpop.f32.mrf.mxu0
        %v1204 = vadd.f32 %v1135, %v1203
        %v1205 = vpop.f32.mrf.mxu0
        %1206 = vmatprep.mubr.f32.mxu0 %v352
        %1207 = vmatmul.mubr.f32.gmra.mxu0 %v351
        %v1208 = vpop.f32.mrf.mxu0
        %v1209 = vadd.f32 %v1135, %v1208
        %v1210 = vpop.f32.mrf.mxu0
        %1211 = vdwg.mxu0
        %v1212 = vsel %vm436, %v1204, -inf
        %1213 = vmax.xlane.f32.xlu0 %v1212
        %v1214 = vpop.xlane.xlu0 %1213
        %v1215 = vsel %vm440, %v1209, -inf
        %1216 = vmax.xlane.f32.xlu0 %v1215
        %v1217 = vpop.xlane.xlu0 %1216
        %v1218 = vsub.f32 %v1204, %v1214
        %v1219 = vsub.f32 %v1209, %v1217
        %v1220 = vmul.f32 %v1218, 1.442695
        %v1221 = vpow.pop %v1220
        %v1222 = vmul.f32 %v1219, 1.442695
        %v1223 = vpow.pop %v1222
        %v1224 = vsel %vm436, %v1221, 0.0
        %1225 = vadd.xlane.f32.xlu0 %v1224
        %v1226 = vpop.xlane.xlu0 %1225
        %v1227 = vsel %vm440, %v1223, 0.0
        %1228 = vadd.xlane.f32.xlu0 %v1227
        %v1229 = vpop.xlane.xlu0 %1228
        %v1230 = vlog2.pop %v1226
        %v1231 = vmul.f32 %v1230, 0.6931472
        %v1232 = vlog2.pop %v1229
        %v1233 = vmul.f32 %v1232, 0.6931472
        %v1234 = vsub.f32 %v1218, %v1231
        %v1235 = vsub.f32 %v1219, %v1233
        %v1236 = vmul.f32 %v1234, %v353
        %v1237 = vmul.f32 %v1235, %v354
        %v1238 = vsel %vm436, %v1236, 0.0
        %v1239 = vsel %vm440, %v1237, 0.0
        %v1240 = vadd.f32 %v1238, %v1239
        %1241 = vadd.xlane.f32.xlu0 %v1240
        %v1242 = vpop.xlane.xlu0 %1241
        %v1243 = vrot.slane %v1242, 4
        %v1244 = vadd.f32 %v1242, %v1243
        %v1245 = vrot.slane %v1244, 2
        %v1246 = vadd.f32 %v1244, %v1245
        %v1247 = vrot.slane %v1246, 1
        %v1248 = vadd.f32 %v1246, %v1247
        %s1249 = vtos %v1248
        %v1250 = vstv %s1249
        %v1251 = vsub.f32 0.0, %v1250
        %v1252 = vmul.f32 %v1251, 0.06666667
        %vm1253 = vcmp.eq.f32.partialorder %v1204, %v1214
        %vm1254 = vcmp.eq.f32.partialorder %v1209, %v1217
        %v1255 = vsel %vm1253, %v480, 5
        %v1256 = vsel %vm1254, %v480, 5
        %v1257 = vsel %vm436, %v1255, 2147483647
        %v1258 = vand.u32 %v1257, 65535
        %v1259 = vshra.s32 %v1257, 16
        %v1260 = vcvt.s32.f32 %v1258
        %v1261 = vcvt.s32.f32 %v1259
        %1262 = vmin.xlane.f32.xlu0 %v1261
        %v1263 = vpop.xlane.xlu0 %1262
        %vm1264 = vcmp.eq.f32.partialorder %v1261, %v1263
        %v1265 = vsel %vm1264, %v1260, inf
        %1266 = vmin.xlane.f32.xlu0 %v1265
        %v1267 = vpop.xlane.xlu0 %1266
        %v1268 = vcvt.f32.s32 %v1267
        %v1269 = vcvt.f32.s32 %v1263
        %v1270 = vshll.u32 %v1269, 16
        %v1271 = vadd.s32 %v1270, %v1268
        %v1272 = vsel %vm440, %v1256, 2147483647
        %v1273 = vand.u32 %v1272, 65535
        %v1274 = vshra.s32 %v1272, 16
        %v1275 = vcvt.s32.f32 %v1273
        %v1276 = vcvt.s32.f32 %v1274
        %1277 = vmin.xlane.f32.xlu0 %v1276
        %v1278 = vpop.xlane.xlu0 %1277
        %vm1279 = vcmp.eq.f32.partialorder %v1276, %v1278
        %v1280 = vsel %vm1279, %v1275, inf
        %1281 = vmin.xlane.f32.xlu0 %v1280
        %v1282 = vpop.xlane.xlu0 %1281
        %v1283 = vcvt.f32.s32 %v1282
        %v1284 = vcvt.f32.s32 %v1278
        %v1285 = vshll.u32 %v1284, 16
        %v1286 = vadd.s32 %v1285, %v1283
        %vm1287 = vcmp.eq.s32.totalorder %v480, %v1271
        %vm1288 = vcmp.eq.s32.totalorder %v480, %v1286
        %v1289 = vsel %vm1287, 1, 0
        %v1290 = vsel %vm1288, 1, 0
        %v1291 = vcvt.s32.f32 %v1289
        %v1292 = vcvt.s32.f32 %v1290
        %v1293 = vmul.f32 %v1291, %v353
        %v1294 = vmul.f32 %v1292, %v354
        %v1295 = vsel %vm436, %v1293, 0.0
        %v1296 = vsel %vm440, %v1294, 0.0
        %v1297 = vadd.f32 %v1295, %v1296
        %1298 = vadd.xlane.f32.xlu0 %v1297
        %v1299 = vpop.xlane.xlu0 %1298
        %v1300 = vrot.slane %v1299, 4
        %v1301 = vadd.f32 %v1299, %v1300
        %v1302 = vrot.slane %v1301, 2
        %v1303 = vadd.f32 %v1301, %v1302
        %v1304 = vrot.slane %v1303, 1
        %v1305 = vadd.f32 %v1303, %v1304
        %s1306 = vtos %v1305
        %vm1307 = vcmask 16400
        %1308 = vst.msk [vmem:[%s317] sm:$0x1] %vm1307, %v1252
        %v1309 = vstv %s1306
        %1310 = vst.msk [vmem:[%s323] sm:$0x1] %vm1307, %v1309
        %1311 = vmatprep.subr.mxu0 0.0
        %1312 = vmatpush1.xpose.msra.mxu0 0.0
        %1313 = vmatprep.subr.mxu0 0.0
        %1314 = vmatpush1.xpose.msra.mxu0 0.0
        %1315 = vmatprep.subr.mxu0 0.0
        %1316 = vmatpush1.xpose.msra.mxu0 0.0
        %1317 = vmatprep.subr.mxu0 0.0
        %1318 = vmatpush1.xpose.msra.mxu0 0.0
        %1319 = vmatprep.subr.mxu0 0.0
        %1320 = vmatpush1.xpose.msra.mxu0 0.0
        %1321 = vmatprep.subr.mxu0 0.0
        %1322 = vmatpush1.xpose.msra.mxu0 0.0
        %1323 = vmatprep.subr.mxu0 0.0
        %1324 = vmatpush1.xpose.msra.mxu0 0.0
        %1325 = vmatprep.subr.mxu0 0.0
        %1326 = vmatpush1.xpose.msra.mxu0 0.0
        %1327 = vmatprep.subr.mxu0 0.0
        %1328 = vmatpush1.xpose.msra.mxu0 0.0
        %1329 = vmatprep.subr.mxu0 0.0
        %1330 = vmatpush1.xpose.msra.mxu0 0.0
        %1331 = vmatprep.subr.mxu0 0.0
        %1332 = vmatpush1.xpose.msra.mxu0 0.0
        %1333 = vmatprep.subr.mxu0 0.0
        %1334 = vmatpush1.xpose.msra.mxu0 0.0
        %1335 = vmatprep.subr.mxu0 0.0
        %1336 = vmatpush1.xpose.msra.mxu0 0.0
        %1337 = vmatprep.subr.mxu0 0.0
        %1338 = vmatpush1.xpose.msra.mxu0 0.0
        %1339 = vmatprep.subr.mxu0 0.0
        %1340 = vmatpush1.xpose.msra.mxu0 0.0
        %1341 = vmatprep.subr.mxu0 %v1128
        %1342 = vmatpush1.xpose.msra.mxu0 %v1127
        %1343 = vmatprep.subr.mxu0 0.0
        %1344 = vmatpush2.xpose.msra.mxu0 0.0
        %1345 = vmatprep.subr.mxu0 0.0
        %1346 = vmatpush2.xpose.msra.mxu0 0.0
        %1347 = vmatprep.subr.mxu0 0.0
        %1348 = vmatpush2.xpose.msra.mxu0 0.0
        %1349 = vmatprep.subr.mxu0 0.0
        %1350 = vmatpush2.xpose.msra.mxu0 0.0
        %1351 = vmatprep.subr.mxu0 0.0
        %1352 = vmatpush2.xpose.msra.mxu0 0.0
        %1353 = vmatprep.subr.mxu0 0.0
        %1354 = vmatpush2.xpose.msra.mxu0 0.0
        %1355 = vmatprep.subr.mxu0 0.0
        %1356 = vmatpush2.xpose.msra.mxu0 0.0
        %1357 = vmatprep.subr.mxu0 0.0
        %1358 = vmatpush2.xpose.msra.mxu0 0.0
        %1359 = vmatprep.subr.mxu0 0.0
        %1360 = vmatpush2.xpose.msra.mxu0 0.0
        %1361 = vmatprep.subr.mxu0 0.0
        %1362 = vmatpush2.xpose.msra.mxu0 0.0
        %1363 = vmatprep.subr.mxu0 0.0
        %1364 = vmatpush2.xpose.msra.mxu0 0.0
        %1365 = vmatprep.subr.mxu0 0.0
        %1366 = vmatpush2.xpose.msra.mxu0 0.0
        %1367 = vmatprep.subr.mxu0 0.0
        %1368 = vmatpush2.xpose.msra.mxu0 0.0
        %1369 = vmatprep.subr.mxu0 0.0
        %1370 = vmatpush2.xpose.msra.mxu0 0.0
        %1371 = vmatprep.subr.mxu0 0.0
        %1372 = vmatpush2.xpose.msra.mxu0 0.0
        %1373 = vmatprep.subr.mxu0 0.0
        %1374 = vmatpush2.xpose.msra.mxu0 0.0
        %1375 = vmatprep.mubr.f32.mxu0 %v347
        %1376 = vmatmul.mubr.f32.gmra.mxu0 %v346
        %v1377 = vpop.f32.mrf.mxu0
        %v1378 = vadd.f32 %v1135, %v1377
        %v1379 = vpop.f32.mrf.mxu0
        %1380 = vdwg.mxu0
        %v1381 = vsel %vm609, %v1378, -inf
        %1382 = vmax.xlane.f32.xlu0 %v1381
        %v1383 = vpop.xlane.xlu0 %1382
        %v1384 = vsub.f32 %v1378, %v1383
        %v1385 = vmul.f32 %v1384, 1.442695
        %v1386 = vpow.pop %v1385
        %v1387 = vsel %vm609, %v1386, 0.0
        %1388 = vadd.xlane.f32.xlu0 %v1387
        %v1389 = vpop.xlane.xlu0 %1388
        %v1390 = vrcp.pop %v1389
        %v1391 = vmul.f32 %v1386, %v1390
        %v1392 = vsub.f32 %v1391, %v348
        %v1393 = vmul.f32 %v1392, 0.2
        %1394 = vxpose.xlu0.b32.start [1/16] %v1393, 128
        %1395 = vxpose.xlu0.b32.cont [2/16] 0.0, 128
        %1396 = vxpose.xlu0.b32.cont [3/16] 0.0, 128
        %1397 = vxpose.xlu0.b32.cont [4/16] 0.0, 128
        %1398 = vxpose.xlu0.b32.cont [5/16] 0.0, 128
        %1399 = vxpose.xlu0.b32.cont [6/16] 0.0, 128
        %1400 = vxpose.xlu0.b32.cont [7/16] 0.0, 128
        %1401 = vxpose.xlu0.b32.cont [8/16] 0.0, 128
        %1402 = vxpose.xlu0.b32.cont [9/16] 0.0, 128
        %1403 = vxpose.xlu0.b32.cont [10/16] 0.0, 128
        %1404 = vxpose.xlu0.b32.cont [11/16] 0.0, 128
        %1405 = vxpose.xlu0.b32.cont [12/16] 0.0, 128
        %1406 = vxpose.xlu0.b32.cont [13/16] 0.0, 128
        %1407 = vxpose.xlu0.b32.cont [14/16] 0.0, 128
        %1408 = vxpose.xlu0.b32.cont [15/16] 0.0, 128
        %1409 = vxpose.xlu0.b32.end [16/16] 0.0, 128
        %v1410 = vpop.trf.xlu0
        %v1411 = vpop.trf.xlu0
        %v1412 = vpop.trf.xlu0
        %v1413 = vpop.trf.xlu0
        %v1414 = vpop.trf.xlu0
        %v1415 = vpop.trf.xlu0
        %v1416 = vpop.trf.xlu0
        %v1417 = vpop.trf.xlu0
        %v1418 = vpop.trf.xlu0
        %v1419 = vpop.trf.xlu0
        %v1420 = vpop.trf.xlu0
        %v1421 = vpop.trf.xlu0
        %v1422 = vpop.trf.xlu0
        %v1423 = vpop.trf.xlu0
        %v1424 = vpop.trf.xlu0
        %v1425 = vpop.trf.xlu0
        %v1427 = vsel %vm436, %v1410, 0
        %1429 = vmatprep.subr.mxu0 0.0
        %1430 = vmatpush1.msra.mxu0 0.0
        %1431 = vmatprep.subr.mxu0 0.0
        %1432 = vmatpush1.msra.mxu0 0.0
        %1433 = vmatprep.subr.mxu0 0.0
        %1434 = vmatpush1.msra.mxu0 0.0
        %1435 = vmatprep.subr.mxu0 0.0
        %1436 = vmatpush1.msra.mxu0 0.0
        %1437 = vmatprep.subr.mxu0 0.0
        %1438 = vmatpush1.msra.mxu0 0.0
        %1439 = vmatprep.subr.mxu0 0.0
        %1440 = vmatpush1.msra.mxu0 0.0
        %1441 = vmatprep.subr.mxu0 0.0
        %1442 = vmatpush1.msra.mxu0 0.0
        %1443 = vmatprep.subr.mxu0 0.0
        %1444 = vmatpush1.msra.mxu0 0.0
        %1445 = vmatprep.subr.mxu0 0.0
        %1446 = vmatpush1.msra.mxu0 0.0
        %1447 = vmatprep.subr.mxu0 0.0
        %1448 = vmatpush1.msra.mxu0 0.0
        %1449 = vmatprep.subr.mxu0 0.0
        %1450 = vmatpush1.msra.mxu0 0.0
        %1451 = vmatprep.subr.mxu0 0.0
        %1452 = vmatpush1.msra.mxu0 0.0
        %1453 = vmatprep.subr.mxu0 0.0
        %1454 = vmatpush1.msra.mxu0 0.0
        %1455 = vmatprep.subr.mxu0 0.0
        %1456 = vmatpush1.msra.mxu0 0.0
        %1457 = vmatprep.subr.mxu0 0.0
        %1458 = vmatpush1.msra.mxu0 0.0
        %1459 = vmatprep.subr.mxu0 %v663
        %1460 = vmatpush1.msra.mxu0 %v660
        %1461 = vmatprep.subr.mxu0 0.0
        %1462 = vmatpush2.msra.mxu0 0.0
        %1463 = vmatprep.subr.mxu0 0.0
        %1464 = vmatpush2.msra.mxu0 0.0
        %1465 = vmatprep.subr.mxu0 0.0
        %1466 = vmatpush2.msra.mxu0 0.0
        %1467 = vmatprep.subr.mxu0 0.0
        %1468 = vmatpush2.msra.mxu0 0.0
        %1469 = vmatprep.subr.mxu0 0.0
        %1470 = vmatpush2.msra.mxu0 0.0
        %1471 = vmatprep.subr.mxu0 0.0
        %1472 = vmatpush2.msra.mxu0 0.0
        %1473 = vmatprep.subr.mxu0 0.0
        %1474 = vmatpush2.msra.mxu0 0.0
        %1475 = vmatprep.subr.mxu0 0.0
        %1476 = vmatpush2.msra.mxu0 0.0
        %1477 = vmatprep.subr.mxu0 0.0
        %1478 = vmatpush2.msra.mxu0 0.0
        %1479 = vmatprep.subr.mxu0 0.0
        %1480 = vmatpush2.msra.mxu0 0.0
        %1481 = vmatprep.subr.mxu0 0.0
        %1482 = vmatpush2.msra.mxu0 0.0
        %1483 = vmatprep.subr.mxu0 0.0
        %1484 = vmatpush2.msra.mxu0 0.0
        %1485 = vmatprep.subr.mxu0 0.0
        %1486 = vmatpush2.msra.mxu0 0.0
        %1487 = vmatprep.subr.mxu0 0.0
        %1488 = vmatpush2.msra.mxu0 0.0
        %1489 = vmatprep.subr.mxu0 0.0
        %1490 = vmatpush2.msra.mxu0 0.0
        %1491 = vmatprep.subr.mxu0 0.0
        %1492 = vmatpush2.msra.mxu0 0.0
        %1493 = vmatprep.mubr.f32.mxu0 0.0
        %1494 = vmatmul.mubr.f32.gmra.mxu0 %v1427
        %v1495 = vpop.f32.mrf.mxu0
        %v1496 = vadd.f32 0.0, %v1495
        %v1497 = vpop.f32.mrf.mxu0
        %v1498 = vadd.f32 0.0, %v1497
        %1499 = vdwg.mxu0
        %v1500 = vsel %vm609, %v1393, 0.0
        %v1501 = vrot.slane %v1500, 4
        %v1502 = vadd.f32 %v1500, %v1501
        %v1503 = vrot.slane %v1502, 2
        %v1504 = vadd.f32 %v1502, %v1503
        %v1505 = vrot.slane %v1504, 1
        %v1506 = vadd.f32 %v1504, %v1505
        %v1507 = vmul.f32 %v1496, 0.4
        %v1508 = vmul.f32 %v1498, 0.4
        %v1509 = vsub.f32 %v1127, %v1507
        %v1510 = vsub.f32 %v1128, %v1508
        %v1511 = vmul.f32 %v1506, 0.4
        %v1512 = vsub.f32 %v1130, %v1511
        %v1514 = vlaneseq
        %v1515 = vshrl.u32 %v1514, 7
        %v1516 = vsub.s32 0, %v1515
        %v1517 = vrot.slane %v1512, %v1516
        %1519 = vmatprep.subr.mxu0 0.0
        %1520 = vmatpush1.xpose.msra.mxu0 0.0
        %1521 = vmatprep.subr.mxu0 0.0
        %1522 = vmatpush1.xpose.msra.mxu0 0.0
        %1523 = vmatprep.subr.mxu0 0.0
        %1524 = vmatpush1.xpose.msra.mxu0 0.0
        %1525 = vmatprep.subr.mxu0 0.0
        %1526 = vmatpush1.xpose.msra.mxu0 0.0
        %1527 = vmatprep.subr.mxu0 0.0
        %1528 = vmatpush1.xpose.msra.mxu0 0.0
        %1529 = vmatprep.subr.mxu0 0.0
        %1530 = vmatpush1.xpose.msra.mxu0 0.0
        %1531 = vmatprep.subr.mxu0 0.0
        %1532 = vmatpush1.xpose.msra.mxu0 0.0
        %1533 = vmatprep.subr.mxu0 0.0
        %1534 = vmatpush1.xpose.msra.mxu0 0.0
        %1535 = vmatprep.subr.mxu0 0.0
        %1536 = vmatpush1.xpose.msra.mxu0 0.0
        %1537 = vmatprep.subr.mxu0 0.0
        %1538 = vmatpush1.xpose.msra.mxu0 0.0
        %1539 = vmatprep.subr.mxu0 0.0
        %1540 = vmatpush1.xpose.msra.mxu0 0.0
        %1541 = vmatprep.subr.mxu0 0.0
        %1542 = vmatpush1.xpose.msra.mxu0 0.0
        %1543 = vmatprep.subr.mxu0 0.0
        %1544 = vmatpush1.xpose.msra.mxu0 0.0
        %1545 = vmatprep.subr.mxu0 0.0
        %1546 = vmatpush1.xpose.msra.mxu0 0.0
        %1547 = vmatprep.subr.mxu0 0.0
        %1548 = vmatpush1.xpose.msra.mxu0 0.0
        %1549 = vmatprep.subr.mxu0 %v1510
        %1550 = vmatpush1.xpose.msra.mxu0 %v1509
        %1551 = vmatprep.subr.mxu0 0.0
        %1552 = vmatpush2.xpose.msra.mxu0 0.0
        %1553 = vmatprep.subr.mxu0 0.0
        %1554 = vmatpush2.xpose.msra.mxu0 0.0
        %1555 = vmatprep.subr.mxu0 0.0
        %1556 = vmatpush2.xpose.msra.mxu0 0.0
        %1557 = vmatprep.subr.mxu0 0.0
        %1558 = vmatpush2.xpose.msra.mxu0 0.0
        %1559 = vmatprep.subr.mxu0 0.0
        %1560 = vmatpush2.xpose.msra.mxu0 0.0
        %1561 = vmatprep.subr.mxu0 0.0
        %1562 = vmatpush2.xpose.msra.mxu0 0.0
        %1563 = vmatprep.subr.mxu0 0.0
        %1564 = vmatpush2.xpose.msra.mxu0 0.0
        %1565 = vmatprep.subr.mxu0 0.0
        %1566 = vmatpush2.xpose.msra.mxu0 0.0
        %1567 = vmatprep.subr.mxu0 0.0
        %1568 = vmatpush2.xpose.msra.mxu0 0.0
        %1569 = vmatprep.subr.mxu0 0.0
        %1570 = vmatpush2.xpose.msra.mxu0 0.0
        %1571 = vmatprep.subr.mxu0 0.0
        %1572 = vmatpush2.xpose.msra.mxu0 0.0
        %1573 = vmatprep.subr.mxu0 0.0
        %1574 = vmatpush2.xpose.msra.mxu0 0.0
        %1575 = vmatprep.subr.mxu0 0.0
        %1576 = vmatpush2.xpose.msra.mxu0 0.0
        %1577 = vmatprep.subr.mxu0 0.0
        %1578 = vmatpush2.xpose.msra.mxu0 0.0
        %1579 = vmatprep.subr.mxu0 0.0
        %1580 = vmatpush2.xpose.msra.mxu0 0.0
        %1581 = vmatprep.subr.mxu0 0.0
        %1582 = vmatpush2.xpose.msra.mxu0 0.0
        %1583 = vmatprep.mubr.f32.mxu0 %v350
        %1584 = vmatmul.mubr.f32.gmra.mxu0 %v349
        %v1585 = vpop.f32.mrf.mxu0
        %v1586 = vadd.f32 %v1517, %v1585
        %v1587 = vpop.f32.mrf.mxu0
        %1588 = vmatprep.mubr.f32.mxu0 %v352
        %1589 = vmatmul.mubr.f32.gmra.mxu0 %v351
        %v1590 = vpop.f32.mrf.mxu0
        %v1591 = vadd.f32 %v1517, %v1590
        %v1592 = vpop.f32.mrf.mxu0
        %1593 = vdwg.mxu0
        %v1594 = vsel %vm436, %v1586, -inf
        %1595 = vmax.xlane.f32.xlu0 %v1594
        %v1596 = vpop.xlane.xlu0 %1595
        %v1597 = vsel %vm440, %v1591, -inf
        %1598 = vmax.xlane.f32.xlu0 %v1597
        %v1599 = vpop.xlane.xlu0 %1598
        %v1600 = vsub.f32 %v1586, %v1596
        %v1601 = vsub.f32 %v1591, %v1599
        %v1602 = vmul.f32 %v1600, 1.442695
        %v1603 = vpow.pop %v1602
        %v1604 = vmul.f32 %v1601, 1.442695
        %v1605 = vpow.pop %v1604
        %v1606 = vsel %vm436, %v1603, 0.0
        %1607 = vadd.xlane.f32.xlu0 %v1606
        %v1608 = vpop.xlane.xlu0 %1607
        %v1609 = vsel %vm440, %v1605, 0.0
        %1610 = vadd.xlane.f32.xlu0 %v1609
        %v1611 = vpop.xlane.xlu0 %1610
        %v1612 = vlog2.pop %v1608
        %v1613 = vmul.f32 %v1612, 0.6931472
        %v1614 = vlog2.pop %v1611
        %v1615 = vmul.f32 %v1614, 0.6931472
        %v1616 = vsub.f32 %v1600, %v1613
        %v1617 = vsub.f32 %v1601, %v1615
        %v1618 = vmul.f32 %v1616, %v353
        %v1619 = vmul.f32 %v1617, %v354
        %v1620 = vsel %vm436, %v1618, 0.0
        %v1621 = vsel %vm440, %v1619, 0.0
        %v1622 = vadd.f32 %v1620, %v1621
        %1623 = vadd.xlane.f32.xlu0 %v1622
        %v1624 = vpop.xlane.xlu0 %1623
        %v1625 = vrot.slane %v1624, 4
        %v1626 = vadd.f32 %v1624, %v1625
        %v1627 = vrot.slane %v1626, 2
        %v1628 = vadd.f32 %v1626, %v1627
        %v1629 = vrot.slane %v1628, 1
        %v1630 = vadd.f32 %v1628, %v1629
        %s1631 = vtos %v1630
        %v1632 = vstv %s1631
        %v1633 = vsub.f32 0.0, %v1632
        %v1634 = vmul.f32 %v1633, 0.06666667
        %vm1635 = vcmp.eq.f32.partialorder %v1586, %v1596
        %vm1636 = vcmp.eq.f32.partialorder %v1591, %v1599
        %v1637 = vsel %vm1635, %v480, 5
        %v1638 = vsel %vm1636, %v480, 5
        %v1639 = vsel %vm436, %v1637, 2147483647
        %v1640 = vand.u32 %v1639, 65535
        %v1641 = vshra.s32 %v1639, 16
        %v1642 = vcvt.s32.f32 %v1640
        %v1643 = vcvt.s32.f32 %v1641
        %1644 = vmin.xlane.f32.xlu0 %v1643
        %v1645 = vpop.xlane.xlu0 %1644
        %vm1646 = vcmp.eq.f32.partialorder %v1643, %v1645
        %v1647 = vsel %vm1646, %v1642, inf
        %1648 = vmin.xlane.f32.xlu0 %v1647
        %v1649 = vpop.xlane.xlu0 %1648
        %v1650 = vcvt.f32.s32 %v1649
        %v1651 = vcvt.f32.s32 %v1645
        %v1652 = vshll.u32 %v1651, 16
        %v1653 = vadd.s32 %v1652, %v1650
        %v1654 = vsel %vm440, %v1638, 2147483647
        %v1655 = vand.u32 %v1654, 65535
        %v1656 = vshra.s32 %v1654, 16
        %v1657 = vcvt.s32.f32 %v1655
        %v1658 = vcvt.s32.f32 %v1656
        %1659 = vmin.xlane.f32.xlu0 %v1658
        %v1660 = vpop.xlane.xlu0 %1659
        %vm1661 = vcmp.eq.f32.partialorder %v1658, %v1660
        %v1662 = vsel %vm1661, %v1657, inf
        %1663 = vmin.xlane.f32.xlu0 %v1662
        %v1664 = vpop.xlane.xlu0 %1663
        %v1665 = vcvt.f32.s32 %v1664
        %v1666 = vcvt.f32.s32 %v1660
        %v1667 = vshll.u32 %v1666, 16
        %v1668 = vadd.s32 %v1667, %v1665
        %vm1669 = vcmp.eq.s32.totalorder %v480, %v1653
        %vm1670 = vcmp.eq.s32.totalorder %v480, %v1668
        %v1671 = vsel %vm1669, 1, 0
        %v1672 = vsel %vm1670, 1, 0
        %v1673 = vcvt.s32.f32 %v1671
        %v1674 = vcvt.s32.f32 %v1672
        %v1675 = vmul.f32 %v1673, %v353
        %v1676 = vmul.f32 %v1674, %v354
        %v1677 = vsel %vm436, %v1675, 0.0
        %v1678 = vsel %vm440, %v1676, 0.0
        %v1679 = vadd.f32 %v1677, %v1678
        %1680 = vadd.xlane.f32.xlu0 %v1679
        %v1681 = vpop.xlane.xlu0 %1680
        %v1682 = vrot.slane %v1681, 4
        %v1683 = vadd.f32 %v1681, %v1682
        %v1684 = vrot.slane %v1683, 2
        %v1685 = vadd.f32 %v1683, %v1684
        %v1686 = vrot.slane %v1685, 1
        %v1687 = vadd.f32 %v1685, %v1686
        %s1688 = vtos %v1687
        %vm1689 = vcmask 24600
        %1690 = vst.msk [vmem:[%s317] sm:$0x1] %vm1689, %v1634
        %v1691 = vstv %s1688
        %1692 = vst.msk [vmem:[%s323] sm:$0x1] %vm1689, %v1691
        %s1693 = sand.u32 %s179, 1
        %s1694 = scalar_lea.sflag [#allocation3], %s1693
        %s1695 = sand.u32 %s179, 1
        %s1696 = scalar_lea.vmem [#allocation2], %s1695
        %s1697 = sand.u32 %s205, 1
        %s1698 = scalar_lea.sflag [#allocation5], %s1697
        %s1699 = sand.u32 %s205, 1
        %s1700 = scalar_lea.vmem [#allocation4], %s1699
        // Predicated region
        $region45: #{tpu_custom_call.1} parent=43 // pred_check
          %p1701 = pneg %p189
        $region46: #{tpu_custom_call.1} parent=43 // pred_check_branch
          %1703 = sbr.rel (%p1701) target = $region48
        $region47: #{tpu_custom_call.1} parent=43 // pred_region
          %s1705 = ssub.s32 16, 16
          %1706 = vsyncadd %s1694, %s1705
          %s1707 = smul.addr %s25, 16
          %s1708 = scalar_lea.hbm %s6, %s1707
          %s1710 = sshll.u32 %s1696, 4
          %s1711 = int_to_ptr.vmem [resolvable:$true] %s1710
          %1713 = dma.vmem_to_hbm [thread:$0]  %s1711, 16, %s1708, %s1694
        $region48: #{tpu_custom_call.1} parent=43 // pred_fallthru
          _
        // Predicated region
        $region49: #{tpu_custom_call.1} parent=43 // pred_check
          %p1714 = pneg %p215
        $region50: #{tpu_custom_call.1} parent=43 // pred_check_branch
          %1716 = sbr.rel (%p1714) target = $region52
        $region51: #{tpu_custom_call.1} parent=43 // pred_region
          %s1718 = ssub.s32 16, 16
          %1719 = vsyncadd %s1698, %s1718
          %s1720 = smul.addr %s25, 16
          %s1721 = scalar_lea.hbm %s7, %s1720
          %s1723 = sshll.u32 %s1700, 4
          %s1724 = int_to_ptr.vmem [resolvable:$true] %s1723
          %1726 = dma.vmem_to_hbm [thread:$0]  %s1724, 16, %s1721, %s1698
        $region52: #{tpu_custom_call.1} parent=43 // pred_fallthru
          _
      $region44: #{tpu_custom_call.1} parent=5 // pred_fallthru
        _
      %p1727 = scmp.le.s32.totalorder 2, %s20
      // Predicated region
      $region53: #{tpu_custom_call.1} parent=5 // pred_check
        %p1728 = pneg %p1727
      $region54: #{tpu_custom_call.1} parent=5 // pred_check_branch
        %1730 = sbr.rel (%p1728) target = $region56
      $region55: #{tpu_custom_call.1} parent=5 // pred_region
        %s1731 = ssub.s32 %s20, 2
        // Predicated region
        $region57: #{tpu_custom_call.1} parent=55 // pred_check
          %p1732 = pneg %p195
        $region58: #{tpu_custom_call.1} parent=55 // pred_check_branch
          %1734 = sbr.rel (%p1732) target = $region60
        $region59: #{tpu_custom_call.1} parent=55 // pred_region
          %s1735 = sand.u32 %s180, 1
          %s1736 = scalar_lea.sflag [#allocation3], %s1735
          %s1737 = sand.u32 %s180, 1
          %s1738 = scalar_lea.vmem [#allocation2], %s1737
          %1739 = dma.done %s1736, 16
        $region60: #{tpu_custom_call.1} parent=55 // pred_fallthru
          _
        // Predicated region
        $region61: #{tpu_custom_call.1} parent=55 // pred_check
          %p1740 = pneg %p221
        $region62: #{tpu_custom_call.1} parent=55 // pred_check_branch
          %1742 = sbr.rel (%p1740) target = $region64
        $region63: #{tpu_custom_call.1} parent=55 // pred_region
          %s1743 = sand.u32 %s206, 1
          %s1744 = scalar_lea.sflag [#allocation5], %s1743
          %s1745 = sand.u32 %s206, 1
          %s1746 = scalar_lea.vmem [#allocation4], %s1745
          %1747 = dma.done %s1744, 16
        $region64: #{tpu_custom_call.1} parent=55 // pred_fallthru
          _
      $region56: #{tpu_custom_call.1} parent=5 // pred_fallthru
        _
    $region6: #{tpu_custom_call.1} parent=1 // loop_footer
      %s24 = sadd.s32 1, %s20
    $region7: #{tpu_custom_call.1} parent=1 // loop_footer_branch
      %19 = sbr.rel target = $region3
    $region8: #{tpu_custom_call.1} parent=1 // loop_exit
      _
    %1748 = vsyncpa [#allocation3], 1
    %s1749 = scalar_lea.sflag [#allocation3], 1
    %1750 = vsyncpa %s1749, 1
    %1751 = vsyncpa [#allocation5], 1
    %s1752 = scalar_lea.sflag [#allocation5], 1
    %1753 = vsyncpa %s1752, 1

</llo_original>
